<compile_context>
chip_gen: v7x
topology: tpu7x:2x2x1
jax: 0.10.0
libtpu: 0.0.40
codegen_flags: <defaults>
</compile_context>

<pallas_src>
from functools import partial

import jax
import jax.numpy as jnp
from jax.experimental import pallas as pl
from jax.experimental.pallas import tpu as pltpu


def _round_up(v, m):
    return ((v + m - 1) // m) * m


def _pick_row_tile(Ho, Wo, target_pixels=128):
    """Largest divisor of Ho with roughly `target_pixels` output pixels/tile."""
    cap = max(1, target_pixels // max(Wo, 1))
    th = 1
    for d in range(1, min(cap, Ho) + 1):
        if Ho % d == 0:
            th = d
    return th


# ----------------------------------------------------------------------------
# Kernel 1: convolution for one (batch, row-tile) grid point, single matmul,
# plus per-tile BatchNorm partial statistics (sum, sum of squares).
# ----------------------------------------------------------------------------
def _conv_kernel(x_ref, w_ref, o_ref, stats_ref, *, KH, KW, TH, Wo, sh, sw):
    # x_ref:     (1, Hp, Wp, Cin_pad)   full padded image of this batch element
    #                                   (fetched once per batch: block index is
    #                                    constant across the row-tile axis)
    # w_ref:     (KH*KW*Cin_pad, Cout_pad)
    # o_ref:     (1, TH, Wo, Cout_pad)  conv output rows of the current tile
    # stats_ref: (1, 1, 8, Cout_pad)    row 0 = per-channel sum, row 1 = sumsq
    Cin_pad = x_ref.shape[3]
    Cout_pad = o_ref.shape[3]

    rt = pl.program_id(1)
    th_in = (TH - 1) * sh + KH                      # input rows for this tile
    row0 = rt * (TH * sh)
    if (TH * sh) % 8 == 0:
        row0 = pl.multiple_of(row0, 8)
    xw = x_ref[0, pl.ds(row0, th_in), :, :].astype(jnp.float32)  # (th_in, Wp, Cin_pad)

    # im2col: gather KH*KW taps, concatenate along the contraction axis
    # (lane-aligned since Cin_pad is a multiple of 128), one MXU push.
    taps = []
    for kh in range(KH):
        for kw in range(KW):
            p = xw[kh:kh + sh * TH:sh, kw:kw + sw * Wo:sw, :]    # (TH, Wo, Cin_pad)
            taps.append(p.reshape(TH * Wo, Cin_pad))
    patch = jnp.concatenate(taps, axis=1)           # (TH*Wo, KH*KW*Cin_pad)

    acc = jnp.dot(patch, w_ref[...].astype(jnp.float32),
                  preferred_element_type=jnp.float32)            # (TH*Wo, Cout_pad)

    # NOTE: conv bias intentionally omitted — training-mode BN cancels it.
    o_ref[0] = acc.reshape(TH, Wo, Cout_pad).astype(o_ref.dtype)

    # Partial BatchNorm statistics for this tile (padded channels are all-zero,
    # so they contribute sum = sumsq = 0 and are harmless).
    s = jnp.sum(acc, axis=0, keepdims=True)                      # (1, Cout_pad)
    ss = jnp.sum(acc * acc, axis=0, keepdims=True)               # (1, Cout_pad)
    stats_ref[0, 0] = jnp.concatenate(
        [s, ss, jnp.zeros((6, Cout_pad), jnp.float32)], axis=0)


# ----------------------------------------------------------------------------
# Kernel 2: normalize + affine + SiLU, tiled identically to the conv output.
# scale = gamma * rsqrt(var + eps), shift = beta - mean * scale are computed
# outside (per-channel, tiny).
# ----------------------------------------------------------------------------
def _bn_silu_kernel(y_ref, scale_ref, shift_ref, o_ref):
    y = y_ref[...].astype(jnp.float32)              # (1, TH, Wo, Cout_pad)
    z = y * scale_ref[0] + shift_ref[0]             # broadcast over channels
    o_ref[...] = (z * jax.nn.sigmoid(z)).astype(o_ref.dtype)     # SiLU via EUP


# ----------------------------------------------------------------------------
# Wrapper (layout transposes, channel/spatial padding, weight reshape,
# per-channel BN affine fold)
# ----------------------------------------------------------------------------
def conv_bnorm_forward(x, weight, bias, gamma, beta, *,
                       stride=(1, 1), padding=None, eps=1e-5,
                       intermediate_dtype=jnp.float32):
    # intermediate_dtype=jnp.bfloat16 halves HBM traffic between the two
    # kernels (useful on v5e); f32 default keeps bit-level headroom.
    del bias  # cancelled exactly by training-mode BatchNorm (mean subtraction)

    N, Cin, H, W = x.shape
    Cout, Cin_w, KH, KW = weight.shape
    assert Cin == Cin_w
    sh, sw = stride
    if padding is None:
        padding = (KH // 2, KW // 2)
    ph, pw = padding
    Ho = (H + 2 * ph - KH) // sh + 1
    Wo = (W + 2 * pw - KW) // sw + 1
    Hp, Wp = H + 2 * ph, W + 2 * pw

    # Lane-dense channel padding.
    Cin_pad = _round_up(Cin, 128)
    Cout_pad = _round_up(Cout, 128)

    # Row tiling of the conv output (also the BN tile).
    TH = _pick_row_tile(Ho, Wo, target_pixels=128)
    n_rt = Ho // TH

    # NCHW -> NHWC, zero-pad spatial dims and channels in one pass.
    # TODO(synk): if the consumer is also NHWC TPU work, skip the entry/exit
    # transposes entirely and keep everything channels-last.
    x_nhwc = jnp.transpose(x, (0, 2, 3, 1))
    x_pad = jnp.pad(x_nhwc, ((0, 0), (ph, ph), (pw, pw), (0, Cin_pad - Cin)))

    # (Cout, Cin, KH, KW) -> (KH, KW, Cin_pad, Cout_pad) -> (KH*KW*Cin_pad, Cout_pad)
    w_t = jnp.transpose(weight, (2, 3, 1, 0)).astype(jnp.float32)
    w_t = jnp.pad(w_t, ((0, 0), (0, 0), (0, Cin_pad - Cin), (0, Cout_pad - Cout)))
    w_r = w_t.reshape(KH * KW * Cin_pad, Cout_pad)

    vmem_limit = 48 * 1024 * 1024   # leaves headroom on v7x's 64 MiB VMEM

    conv_out, stats = pl.pallas_call(
        partial(_conv_kernel, KH=KH, KW=KW, TH=TH, Wo=Wo, sh=sh, sw=sw),
        out_shape=(
            jax.ShapeDtypeStruct((N, Ho, Wo, Cout_pad), intermediate_dtype),
            jax.ShapeDtypeStruct((N, n_rt, 8, Cout_pad), jnp.float32),
        ),
        grid_spec=pltpu.PrefetchScalarGridSpec(
            num_scalar_prefetch=0,
            grid=(N, n_rt),
            in_specs=[
                # Full padded image per batch element; block index is constant
                # across rt so it is DMA'd only when the batch index changes.
                pl.BlockSpec((1, Hp, Wp, Cin_pad), lambda n, rt: (n, 0, 0, 0)),
                pl.BlockSpec((KH * KW * Cin_pad, Cout_pad), lambda n, rt: (0, 0)),
            ],
            out_specs=(
                pl.BlockSpec((1, TH, Wo, Cout_pad), lambda n, rt: (n, rt, 0, 0)),
                pl.BlockSpec((1, 1, 8, Cout_pad), lambda n, rt: (n, rt, 0, 0)),
            ),
        ),
        compiler_params=pltpu.CompilerParams(
            dimension_semantics=("parallel", "parallel"),
            vmem_limit_bytes=vmem_limit),
    )(x_pad, w_r)

    # Per-channel batch statistics -> folded affine (tiny XLA work).
    count = float(N * Ho * Wo)
    sums = jnp.sum(stats[:, :, 0, :], axis=(0, 1))
    sumsq = jnp.sum(stats[:, :, 1, :], axis=(0, 1))
    mean = sums / count
    var = jnp.maximum(sumsq / count - mean * mean, 0.0)   # biased variance
    gamma_p = jnp.pad(gamma.astype(jnp.float32), (0, Cout_pad - Cout))
    beta_p = jnp.pad(beta.astype(jnp.float32), (0, Cout_pad - Cout))
    scale = gamma_p * jax.lax.rsqrt(var + eps)
    shift = beta_p - mean * scale
    scale2 = scale.reshape(1, Cout_pad)
    shift2 = shift.reshape(1, Cout_pad)

    bn_out = pl.pallas_call(
        _bn_silu_kernel,
        out_shape=jax.ShapeDtypeStruct((N, Ho, Wo, Cout_pad), jnp.float32),
        grid_spec=pltpu.PrefetchScalarGridSpec(
            num_scalar_prefetch=0,
            grid=(N, n_rt),
            in_specs=[
                pl.BlockSpec((1, TH, Wo, Cout_pad), lambda n, rt: (n, rt, 0, 0)),
                pl.BlockSpec((1, Cout_pad), lambda n, rt: (0, 0)),
                pl.BlockSpec((1, Cout_pad), lambda n, rt: (0, 0)),
            ],
            out_specs=pl.BlockSpec((1, TH, Wo, Cout_pad),
                                   lambda n, rt: (n, rt, 0, 0)),
        ),
        compiler_params=pltpu.CompilerParams(
            dimension_semantics=("parallel", "parallel"),
            vmem_limit_bytes=vmem_limit),
    )(conv_out, scale2, shift2)

    # Strip channel padding, back to NCHW.
    out_nhwc = bn_out[..., :Cout]
    return jnp.transpose(out_nhwc, (0, 3, 1, 2))


# ----------------------------------------------------------------------------
# Pure-JAX reference for correctness check
# ----------------------------------------------------------------------------
def _reference(x, weight, bias, gamma, beta, stride, padding, eps=1e-5):
    y = jax.lax.conv_general_dilated(
        x, weight, window_strides=stride,
        padding=[(padding[0], padding[0]), (padding[1], padding[1])],
        dimension_numbers=("NCHW", "OIHW", "NCHW"),
        precision=jax.lax.Precision.HIGHEST)
    y = y + bias[None, :, None, None]
    mean = jnp.mean(y, axis=(0, 2, 3), keepdims=True)
    var = jnp.mean((y - mean) ** 2, axis=(0, 2, 3), keepdims=True)
    z = (y - mean) / jnp.sqrt(var + eps)
    z = z * gamma[None, :, None, None] + beta[None, :, None, None]
    return z * jax.nn.sigmoid(z)


if __name__ == "__main__":
    key = jax.random.PRNGKey(0)
    k1, k2, k3 = jax.random.split(key, 3)

    # ConvBNorm(in_channels=4, out_channels=8, kernel_size=3)  (stride=1, pad=1)
    N, Cin, H, W = 2, 4, 16, 16
    Cout, K = 8, 3
    stride = (1, 1)
    padding = (K // 2, K // 2)

    x = jax.random.normal(k1, (N, Cin, H, W), jnp.float32)
    weight = jax.random.normal(k2, (Cout, Cin, K, K), jnp.float32) * 0.1
    bias = jax.random.normal(k3, (Cout,), jnp.float32) * 0.1
    gamma = jnp.ones((Cout,), jnp.float32)   # BatchNorm2d weight init
    beta = jnp.zeros((Cout,), jnp.float32)   # BatchNorm2d bias init

    out = conv_bnorm_forward(x, weight, bias, gamma, beta,
                             stride=stride, padding=padding)
    out = jax.block_until_ready(out)

    ref = _reference(x, weight, bias, gamma, beta, stride, padding)
    max_err = float(jnp.max(jnp.abs(out - ref)))
    assert out.shape == (N, Cout, H, W), out.shape
    assert max_err < 2e-2, f"max abs error {max_err}"

    print("KERNEL_OK")
</pallas_src>

<mosaic_0001>
module attributes {stable_mosaic.version = 11 : i64} {
  func.func @_conv_kernel(%arg0: i32, %arg1: i32, %arg2: memref<1x18x18x128xf32, #tpu.memory_space<vmem>>, %arg3: memref<1152x128xf32, #tpu.memory_space<vmem>>, %arg4: memref<1x8x16x128xf32, #tpu.memory_space<vmem>>, %arg5: memref<1x1x8x128xf32, #tpu.memory_space<vmem>>) attributes {dimension_semantics = [#tpu.dimension_semantics<parallel>, #tpu.dimension_semantics<parallel>], iteration_bounds = array<i64: 2, 2>, scalar_prefetch = 0 : i64, scratch_operands = 0 : i64, tpu.core_type = #tpu.core_type<tc>, window_params = [{transform_indices = @transform_0, window_bounds = array<i64: 1, 18, 18, 128>}, {pipeline_mode = #tpu.pipeline_mode<synchronous>, transform_indices = @transform_1, window_bounds = array<i64: 1152, 128>}, {transform_indices = @transform_2, window_bounds = array<i64: 1, 8, 16, 128>}, {transform_indices = @transform_3, window_bounds = array<i64: 1, 1, 8, 128>}]} {
    %c8_i32 = arith.constant 8 : i32
    %0 = arith.muli %arg1, %c8_i32 : i32
    %1 = tpu.assume_multiple %0, 8 : i32
    %c0 = arith.constant 0 : index
    %2 = arith.index_cast %1 : i32 to index
    %c0_0 = arith.constant 0 : index
    %c0_1 = arith.constant 0 : index
    %3 = vector.load %arg2[%c0, %2, %c0_0, %c0_1] : memref<1x18x18x128xf32, #tpu.memory_space<vmem>>, vector<1x10x18x128xf32>
    %4 = vector.shape_cast %3 : vector<1x10x18x128xf32> to vector<10x18x128xf32>
    %5 = vector.extract_strided_slice %4 {offsets = [0, 0, 0], sizes = [8, 16, 128], strides = [1, 1, 1]} : vector<10x18x128xf32> to vector<8x16x128xf32>
    %6 = vector.shape_cast %5 : vector<8x16x128xf32> to vector<128x128xf32>
    %7 = vector.extract_strided_slice %4 {offsets = [0, 1, 0], sizes = [8, 16, 128], strides = [1, 1, 1]} : vector<10x18x128xf32> to vector<8x16x128xf32>
    %8 = vector.shape_cast %7 : vector<8x16x128xf32> to vector<128x128xf32>
    %9 = vector.extract_strided_slice %4 {offsets = [0, 2, 0], sizes = [8, 16, 128], strides = [1, 1, 1]} : vector<10x18x128xf32> to vector<8x16x128xf32>
    %10 = vector.shape_cast %9 : vector<8x16x128xf32> to vector<128x128xf32>
    %11 = vector.extract_strided_slice %4 {offsets = [1, 0, 0], sizes = [8, 16, 128], strides = [1, 1, 1]} : vector<10x18x128xf32> to vector<8x16x128xf32>
    %12 = vector.shape_cast %11 : vector<8x16x128xf32> to vector<128x128xf32>
    %13 = vector.extract_strided_slice %4 {offsets = [1, 1, 0], sizes = [8, 16, 128], strides = [1, 1, 1]} : vector<10x18x128xf32> to vector<8x16x128xf32>
    %14 = vector.shape_cast %13 : vector<8x16x128xf32> to vector<128x128xf32>
    %15 = vector.extract_strided_slice %4 {offsets = [1, 2, 0], sizes = [8, 16, 128], strides = [1, 1, 1]} : vector<10x18x128xf32> to vector<8x16x128xf32>
    %16 = vector.shape_cast %15 : vector<8x16x128xf32> to vector<128x128xf32>
    %17 = vector.extract_strided_slice %4 {offsets = [2, 0, 0], sizes = [8, 16, 128], strides = [1, 1, 1]} : vector<10x18x128xf32> to vector<8x16x128xf32>
    %18 = vector.shape_cast %17 : vector<8x16x128xf32> to vector<128x128xf32>
    %19 = vector.extract_strided_slice %4 {offsets = [2, 1, 0], sizes = [8, 16, 128], strides = [1, 1, 1]} : vector<10x18x128xf32> to vector<8x16x128xf32>
    %20 = vector.shape_cast %19 : vector<8x16x128xf32> to vector<128x128xf32>
    %21 = vector.extract_strided_slice %4 {offsets = [2, 2, 0], sizes = [8, 16, 128], strides = [1, 1, 1]} : vector<10x18x128xf32> to vector<8x16x128xf32>
    %22 = vector.shape_cast %21 : vector<8x16x128xf32> to vector<128x128xf32>
    %23 = tpu.concatenate %6, %8, %10, %12, %14, %16, %18, %20, %22 in 1 : vector<128x128xf32>, vector<128x128xf32>, vector<128x128xf32>, vector<128x128xf32>, vector<128x128xf32>, vector<128x128xf32>, vector<128x128xf32>, vector<128x128xf32>, vector<128x128xf32> -> vector<128x1152xf32>
    %c0_2 = arith.constant 0 : index
    %c0_3 = arith.constant 0 : index
    %24 = vector.load %arg3[%c0_2, %c0_3] : memref<1152x128xf32, #tpu.memory_space<vmem>>, vector<1152x128xf32>
    %cst = arith.constant dense<0.000000e+00> : vector<128x128xf32>
    %25 = tpu.matmul %23, %24, %cst {dimension_numbers = #tpu.dot_dimension_numbers<[1], [0], [0], [1], [0, 0, 1, 1], [], []>} : vector<128x1152xf32>, vector<1152x128xf32>, vector<128x128xf32> -> vector<128x128xf32>
    %26 = vector.shape_cast %25 : vector<128x128xf32> to vector<8x16x128xf32>
    %c0_4 = arith.constant 0 : index
    %c0_5 = arith.constant 0 : index
    %c0_6 = arith.constant 0 : index
    %c0_7 = arith.constant 0 : index
    %27 = vector.load %arg4[%c0_4, %c0_5, %c0_6, %c0_7] : memref<1x8x16x128xf32, #tpu.memory_space<vmem>>, vector<1x8x16x128xf32>
    %28 = vector.shape_cast %27 : vector<1x8x16x128xf32> to vector<8x16x128xf32>
    %29 = vector.shape_cast %26 : vector<8x16x128xf32> to vector<1x8x16x128xf32>
    tpu.vector_store %arg4[%c0_4, %c0_5, %c0_6, %c0_7], %29 {strides = array<i32>} : memref<1x8x16x128xf32, #tpu.memory_space<vmem>>, vector<1x8x16x128xf32>,
    %cst_8 = arith.constant dense<0.000000e+00> : vector<128xf32>
    %30 = vector.multi_reduction <add>, %25, %cst_8 [0] : vector<128x128xf32> to vector<128xf32>
    %31 = vector.shape_cast %30 : vector<128xf32> to vector<1x128xf32>
    %32 = arith.mulf %25, %25 : vector<128x128xf32>
    %cst_9 = arith.constant dense<0.000000e+00> : vector<128xf32>
    %33 = vector.multi_reduction <add>, %32, %cst_9 [0] : vector<128x128xf32> to vector<128xf32>
    %34 = vector.shape_cast %33 : vector<128xf32> to vector<1x128xf32>
    %cst_10 = arith.constant 0.000000e+00 : f32
    %35 = vector.broadcast %cst_10 : f32 to vector<6x128xf32>
    %36 = tpu.concatenate %31, %34, %35 in 0 : vector<1x128xf32>, vector<1x128xf32>, vector<6x128xf32> -> vector<8x128xf32>
    %c0_11 = arith.constant 0 : index
    %c0_12 = arith.constant 0 : index
    %c0_13 = arith.constant 0 : index
    %c0_14 = arith.constant 0 : index
    %37 = vector.load %arg5[%c0_11, %c0_12, %c0_13, %c0_14] : memref<1x1x8x128xf32, #tpu.memory_space<vmem>>, vector<1x1x8x128xf32>
    %38 = vector.shape_cast %37 : vector<1x1x8x128xf32> to vector<8x128xf32>
    %39 = vector.shape_cast %36 : vector<8x128xf32> to vector<1x1x8x128xf32>
    tpu.vector_store %arg5[%c0_11, %c0_12, %c0_13, %c0_14], %39 {strides = array<i32>} : memref<1x1x8x128xf32, #tpu.memory_space<vmem>>, vector<1x1x8x128xf32>,
    return
  }
  func.func @transform_0(%arg0: i32, %arg1: i32) -> (i32, i32, i32, i32) {
    %c0_i32 = arith.constant 0 : i32
    %c0_i32_0 = arith.constant 0 : i32
    %c0_i32_1 = arith.constant 0 : i32
    %c0_i32_2 = arith.constant 0 : i32
    return %arg0, %c0_i32, %c0_i32_0, %c0_i32_1 : i32, i32, i32, i32
  }
  func.func @transform_1(%arg0: i32, %arg1: i32) -> (i32, i32) {
    %c0_i32 = arith.constant 0 : i32
    %c0_i32_0 = arith.constant 0 : i32
    %c0_i32_1 = arith.constant 0 : i32
    return %c0_i32, %c0_i32_0 : i32, i32
  }
  func.func @transform_2(%arg0: i32, %arg1: i32) -> (i32, i32, i32, i32) {
    %c0_i32 = arith.constant 0 : i32
    %c0_i32_0 = arith.constant 0 : i32
    %c0_i32_1 = arith.constant 0 : i32
    return %arg0, %arg1, %c0_i32, %c0_i32_0 : i32, i32, i32, i32
  }
  func.func @transform_3(%arg0: i32, %arg1: i32) -> (i32, i32, i32, i32) {
    %c0_i32 = arith.constant 0 : i32
    %c0_i32_0 = arith.constant 0 : i32
    %c0_i32_1 = arith.constant 0 : i32
    return %arg0, %arg1, %c0_i32, %c0_i32_0 : i32, i32, i32, i32
  }
}

</mosaic_0001>

<llo_original>
// kernel: tpu_custom_call.1
$region0: #{tpu_custom_call.1}
  #allocation0 [shape = 'u32[]', space=smem, size = 0x4, offset = 0x4, fixed_abs, tag = 'smem constant byte address 0x4 - core index']
  #allocation1 [shape = 'u32[144,128]{1,0:T(1,128)}', space=vmem, size = 0x12000, scoped, tag = 'internal scratch']
  %s0 = inlined_call_operand.vmem [shape: f32[2,18,18,128], index: 0, kind: input, shape index: {}]
  %s1 = inlined_call_operand.vmem [shape: f32[1152,128], index: 1, kind: input, shape index: {}]
  %s2 = inlined_call_operand.hbm [shape: f32[2,16,16,128], index: 2, kind: output, shape index: {0}]
  %s3 = inlined_call_operand.hbm [shape: f32[2,2,8,128], index: 3, kind: output, shape index: {1}]
  %4 = xla_tuple %s2, %s3
  %s5 = sld [smem:[#allocation0]]
  $region49: #{tpu_custom_call.1} parent=0
    _
  %s7 = ssub.s32 1, %s5
  %s8 = scalar_select 0, %s7, %s5
  $region1: #{tpu_custom_call.1} parent=0
    #allocation2 [shape = 'u8[131072]{0}', space=vmem, size = 0x20000, scoped, tag = 'output window, operand 0']
    #allocation3 [shape = 's32[2]{0}', space=sflag, size = 0x8, scoped, tag = 'scoped memory for tpu_custom_call.1']
    #allocation4 [shape = 'u8[8192]{0}', space=vmem, size = 0x2000, scoped, tag = 'output window, operand 1']
    #allocation5 [shape = 's32[2]{0}', space=sflag, size = 0x8, scoped, tag = 'scoped memory for tpu_custom_call.1']
    %9 = vsyncpa [#allocation3], 0
    %s10 = scalar_lea.sflag [#allocation3], 1
    %11 = vsyncpa %s10, 0
    %12 = vsyncpa [#allocation5], 0
    %s13 = scalar_lea.sflag [#allocation5], 1
    %14 = vsyncpa %s13, 0
    loop: start=0, step=1, limit=6
    $region2: #{tpu_custom_call.1} parent=1 // loop_pre_header
      _
    $region3: #{tpu_custom_call.1} parent=1 // loop_header
      %s16 = sphi 0, %s20
      %p17 = scmp.ge.s32.totalorder %s16, 6
      %s23 = sphi 0, %s35
      %s24 = sphi 0, %s31
      %s25 = sphi 0, %s23
      %s26 = sphi 0, %s24
      %s27 = sphi 0, %s25
      %s28 = sphi 0, %s26
      %s38 = sphi 0, %s40
      %s41 = sphi 0, %s38
      %s42 = sphi 0, %s41
      %s58 = sphi 0, %s42
      %s62 = sphi 0, %s62
      %s64 = sphi 0, %s62
      %s65 = sphi 0, %s64
      %s79 = sphi 0, %s65
      %s87 = sphi 0, %s89
      %s90 = sphi 0, %s87
      %s91 = sphi 0, %s90
      %s107 = sphi 0, %s91
      %s115 = sphi 0, %s117
      %s118 = sphi 0, %s115
      %s119 = sphi 0, %s118
      %s135 = sphi 0, %s119
    $region4: #{tpu_custom_call.1} parent=1 // loop_header_branch
      %19 = sbr.rel (%p17) target = $region8
    $region5: #{tpu_custom_call.1} parent=1 // loop_body
      %s21 = ssub.s32 %s16, 1
      %s22 = ssub.s32 %s16, 2
      %s29 = sadd.s32 1, %s24
      %p30 = scmp.ge.s32.totalorder %s29, 2
      %s31 = scalar_select %p30, 0, %s29
      %s32 = sadd.s32 1, %s23
      %s33 = scalar_select %p30, %s32, %s23
      %p34 = scmp.ge.s32.totalorder %s33, 2
      %s35 = scalar_select %p34, 0, %s33
      %s36 = ssub.s32 %s23, %s35
      %p37 = scmp.eq.s32.totalorder %s36, 0
      %s39 = sadd.s32 %s38, 1
      %s40 = scalar_select %p37, %s38, %s39
      %p43 = pneg %p37
      %p44 = scmp.eq.s32.totalorder %s16, 3
      %p45 = por %p43, %p44
      %p46 = scmp.ne.s32.totalorder %s38, %s41
      %p47 = scmp.eq.s32.totalorder %s16, 0
      %p48 = por %p46, %p47
      %p49 = scmp.ne.s32.totalorder %s38, %s41
      %p50 = scmp.eq.s32.totalorder %s21, 3
      %p51 = por %p49, %p50
      %p52 = scmp.ne.s32.totalorder %s41, %s42
      %p53 = scmp.eq.s32.totalorder %s21, 0
      %p54 = por %p52, %p53
      %p55 = scmp.ne.s32.totalorder %s41, %s42
      %p56 = scmp.eq.s32.totalorder %s22, 3
      %p57 = por %p55, %p56
      %p59 = scmp.ne.s32.totalorder %s42, %s58
      %p60 = scmp.eq.s32.totalorder %s22, 0
      %p61 = por %p59, %p60
      %s63 = sadd.s32 %s62, 1
      %p66 = scmp.eq.s32.totalorder %s16, 3
      %p67 = scmp.ne.s32.totalorder %s62, %s64
      %p68 = scmp.eq.s32.totalorder %s16, 0
      %p69 = por %p67, %p68
      %p70 = scmp.ne.s32.totalorder %s62, %s64
      %p71 = scmp.eq.s32.totalorder %s21, 3
      %p72 = por %p70, %p71
      %p73 = scmp.ne.s32.totalorder %s64, %s65
      %p74 = scmp.eq.s32.totalorder %s21, 0
      %p75 = por %p73, %p74
      %p76 = scmp.ne.s32.totalorder %s64, %s65
      %p77 = scmp.eq.s32.totalorder %s22, 3
      %p78 = por %p76, %p77
      %p80 = scmp.ne.s32.totalorder %s65, %s79
      %p81 = scmp.eq.s32.totalorder %s22, 0
      %p82 = por %p80, %p81
      %s83 = ssub.s32 %s23, %s35
      %s84 = ssub.s32 %s24, %s31
      %s85 = sor.u32 %s83, %s84
      %p86 = scmp.eq.s32.totalorder %s85, 0
      %s88 = sadd.s32 %s87, 1
      %s89 = scalar_select %p86, %s87, %s88
      %p92 = pneg %p86
      %p93 = scmp.eq.s32.totalorder %s16, 3
      %p94 = por %p92, %p93
      %p95 = scmp.ne.s32.totalorder %s87, %s90
      %p96 = scmp.eq.s32.totalorder %s16, 0
      %p97 = por %p95, %p96
      %p98 = scmp.ne.s32.totalorder %s87, %s90
      %p99 = scmp.eq.s32.totalorder %s21, 3
      %p100 = por %p98, %p99
      %p101 = scmp.ne.s32.totalorder %s90, %s91
      %p102 = scmp.eq.s32.totalorder %s21, 0
      %p103 = por %p101, %p102
      %p104 = scmp.ne.s32.totalorder %s90, %s91
      %p105 = scmp.eq.s32.totalorder %s22, 3
      %p106 = por %p104, %p105
      %p108 = scmp.ne.s32.totalorder %s91, %s107
      %p109 = scmp.eq.s32.totalorder %s22, 0
      %p110 = por %p108, %p109
      %s111 = ssub.s32 %s23, %s35
      %s112 = ssub.s32 %s24, %s31
      %s113 = sor.u32 %s111, %s112
      %p114 = scmp.eq.s32.totalorder %s113, 0
      %s116 = sadd.s32 %s115, 1
      %s117 = scalar_select %p114, %s115, %s116
      %p120 = pneg %p114
      %p121 = scmp.eq.s32.totalorder %s16, 3
      %p122 = por %p120, %p121
      %p123 = scmp.ne.s32.totalorder %s115, %s118
      %p124 = scmp.eq.s32.totalorder %s16, 0
      %p125 = por %p123, %p124
      %p126 = scmp.ne.s32.totalorder %s115, %s118
      %p127 = scmp.eq.s32.totalorder %s21, 3
      %p128 = por %p126, %p127
      %p129 = scmp.ne.s32.totalorder %s118, %s119
      %p130 = scmp.eq.s32.totalorder %s21, 0
      %p131 = por %p129, %p130
      %p132 = scmp.ne.s32.totalorder %s118, %s119
      %p133 = scmp.eq.s32.totalorder %s22, 3
      %p134 = por %p132, %p133
      %p136 = scmp.ne.s32.totalorder %s119, %s135
      %p137 = scmp.eq.s32.totalorder %s22, 0
      %p138 = por %p136, %p137
      %p139 = scmp.le.s32.totalorder 1, %s16
      %p140 = scmp.lt.s32.totalorder %s16, 5
      %p141 = pnand %p139, %p140
      %p142 = pneg %p141
      // Predicated region
      $region9: #{tpu_custom_call.1} parent=5 // pred_check
        _
      $region10: #{tpu_custom_call.1} parent=5 // pred_check_branch
        %144 = sbr.rel (%p141) target = $region12
      $region11: #{tpu_custom_call.1} parent=5 // pred_region
        %s145 = ssub.s32 %s16, 1
        // Predicated region
        $region13: #{tpu_custom_call.1} parent=11 // pred_check
          %p146 = pneg %p75
        $region14: #{tpu_custom_call.1} parent=11 // pred_check_branch
          %148 = sbr.rel (%p146) target = $region16
        $region15: #{tpu_custom_call.1} parent=11 // pred_region
          _
        $region16: #{tpu_custom_call.1} parent=11 // pred_fallthru
          _
      $region12: #{tpu_custom_call.1} parent=5 // pred_fallthru
        _
      %p149 = scmp.lt.s32.totalorder %s16, 4
      // Predicated region
      $region17: #{tpu_custom_call.1} parent=5 // pred_check
        %p150 = pneg %p149
      $region18: #{tpu_custom_call.1} parent=5 // pred_check_branch
        %152 = sbr.rel (%p150) target = $region20
      $region19: #{tpu_custom_call.1} parent=5 // pred_region
        // Predicated region
        $region21: #{tpu_custom_call.1} parent=19 // pred_check
          %p153 = pneg %p48
        $region22: #{tpu_custom_call.1} parent=19 // pred_check_branch
          %155 = sbr.rel (%p153) target = $region24
        $region23: #{tpu_custom_call.1} parent=19 // pred_region
          %p156 = scmp.lt.s32.totalorder %s23, 1
          %s157 = scalar_select %p156, %s23, 1
          %s158 = smul.addr %s157, 54
          %s159 = smul.addr %s158, 8
          %s160 = scalar_lea.vmem %s0, %s159
        $region24: #{tpu_custom_call.1} parent=19 // pred_fallthru
          _
      $region20: #{tpu_custom_call.1} parent=5 // pred_fallthru
        _
      %p161 = scmp.le.s32.totalorder 1, %s16
      %p162 = scmp.lt.s32.totalorder %s16, 5
      %p163 = pnand %p161, %p162
      %p164 = pneg %p163
      // Predicated region
      $region25: #{tpu_custom_call.1} parent=5 // pred_check
        _
      $region26: #{tpu_custom_call.1} parent=5 // pred_check_branch
        %166 = sbr.rel (%p163) target = $region28
      $region27: #{tpu_custom_call.1} parent=5 // pred_region
        %s167 = ssub.s32 %s16, 1
        %p168 = scmp.lt.s32.totalorder %s25, 1
        %s169 = scalar_select %p168, %s25, 1
        %s170 = smul.addr %s169, 54
        %s171 = smul.addr %s170, 8
        %s172 = scalar_lea.vmem %s0, %s171
        %p173 = pneg %p54
        %p174 = pneg %p51
        %p175 = pneg %p75
        %p176 = pneg %p72
        %p177 = pneg %p103
        %p178 = pneg %p100
        %s179 = sand.u32 %s90, 1
        %s180 = scalar_lea.sflag [#allocation3], %s179
        %s181 = sand.u32 %s90, 1
        %s182 = smul.addr %s181, 128
        %s183 = scalar_lea.vmem [#allocation2], %s182
        %p184 = pneg %p131
        %p185 = pneg %p128
        %s186 = sand.u32 %s118, 1
        %s187 = scalar_lea.sflag [#allocation5], %s186
        %s188 = sand.u32 %s118, 1
        %s189 = smul.addr %s188, 8
        %s190 = scalar_lea.vmem [#allocation4], %s189
        %p191 = scmp.lt.s32.totalorder %s25, 1
        %s192 = scalar_select %p191, %s25, 1
        %s193 = smul.addr %s192, 54
        %s194 = smul.addr %s193, 8
        %s195 = scalar_lea.vmem %s0, %s194
        %s196 = smul.u32 8, %s26
        %s197 = smul.u32 %s26, 8
        %s198 = smul.u32 %s197, 24
        %s199 = scalar_lea.vmem %s195, %s198
        %v200 = vld [vmem:[%s199] sm:$0xff]
        %v201 = vld [vmem:[%s199 + $0x8] sm:$0xff]
        %v202 = vld [vmem:[%s199 + $0x10] sm:$0x3]
        %v203 = vld [vmem:[%s199 + $0x18] sm:$0xff]
        %v204 = vld [vmem:[%s199 + $0x20] sm:$0xff]
        %v205 = vld [vmem:[%s199 + $0x28] sm:$0x3]
        %v206 = vld [vmem:[%s199 + $0x30] sm:$0xff]
        %v207 = vld [vmem:[%s199 + $0x38] sm:$0xff]
        %v208 = vld [vmem:[%s199 + $0x40] sm:$0x3]
        %v209 = vld [vmem:[%s199 + $0x48] sm:$0xff]
        %v210 = vld [vmem:[%s199 + $0x50] sm:$0xff]
        %v211 = vld [vmem:[%s199 + $0x58] sm:$0x3]
        %v212 = vld [vmem:[%s199 + $0x60] sm:$0xff]
        %v213 = vld [vmem:[%s199 + $0x68] sm:$0xff]
        %v214 = vld [vmem:[%s199 + $0x70] sm:$0x3]
        %v215 = vld [vmem:[%s199 + $0x78] sm:$0xff]
        %v216 = vld [vmem:[%s199 + $0x80] sm:$0xff]
        %v217 = vld [vmem:[%s199 + $0x88] sm:$0x3]
        %v218 = vld [vmem:[%s199 + $0x90] sm:$0xff]
        %v219 = vld [vmem:[%s199 + $0x98] sm:$0xff]
        %v220 = vld [vmem:[%s199 + $0xa0] sm:$0x3]
        %v221 = vld [vmem:[%s199 + $0xa8] sm:$0xff]
        %v222 = vld [vmem:[%s199 + $0xb0] sm:$0xff]
        %v223 = vld [vmem:[%s199 + $0xb8] sm:$0x3]
        %v224 = vld [vmem:[%s199 + $0xc0] sm:$0xff]
        %v225 = vld [vmem:[%s199 + $0xc8] sm:$0xff]
        %v226 = vld [vmem:[%s199 + $0xd0] sm:$0x3]
        %v227 = vld [vmem:[%s199 + $0xd8] sm:$0xff]
        %v228 = vld [vmem:[%s199 + $0xe0] sm:$0xff]
        %v229 = vld [vmem:[%s199 + $0xe8] sm:$0x3]
        %vm254 = vcmask 1046528
        %v255 = vrot.slane %v200, 1
        %v256 = vrot.slane %v201, 1
        %v257 = vsel %vm254, %v255, %v256
        %v258 = vrot.slane %v202, 1
        %v259 = vsel %vm254, %v256, %v258
        %v260 = vrot.slane %v203, 1
        %v261 = vrot.slane %v204, 1
        %v262 = vsel %vm254, %v260, %v261
        %v263 = vrot.slane %v205, 1
        %v264 = vsel %vm254, %v261, %v263
        %v265 = vrot.slane %v206, 1
        %v266 = vrot.slane %v207, 1
        %v267 = vsel %vm254, %v265, %v266
        %v268 = vrot.slane %v208, 1
        %v269 = vsel %vm254, %v266, %v268
        %v270 = vrot.slane %v209, 1
        %v271 = vrot.slane %v210, 1
        %v272 = vsel %vm254, %v270, %v271
        %v273 = vrot.slane %v211, 1
        %v274 = vsel %vm254, %v271, %v273
        %v275 = vrot.slane %v212, 1
        %v276 = vrot.slane %v213, 1
        %v277 = vsel %vm254, %v275, %v276
        %v278 = vrot.slane %v214, 1
        %v279 = vsel %vm254, %v276, %v278
        %v280 = vrot.slane %v215, 1
        %v281 = vrot.slane %v216, 1
        %v282 = vsel %vm254, %v280, %v281
        %v283 = vrot.slane %v217, 1
        %v284 = vsel %vm254, %v281, %v283
        %v285 = vrot.slane %v218, 1
        %v286 = vrot.slane %v219, 1
        %v287 = vsel %vm254, %v285, %v286
        %v288 = vrot.slane %v220, 1
        %v289 = vsel %vm254, %v286, %v288
        %v290 = vrot.slane %v221, 1
        %v291 = vrot.slane %v222, 1
        %v292 = vsel %vm254, %v290, %v291
        %v293 = vrot.slane %v223, 1
        %v294 = vsel %vm254, %v291, %v293
        %vm311 = vcmask 1045504
        %v312 = vrot.slane %v200, 2
        %v313 = vrot.slane %v201, 2
        %v314 = vsel %vm311, %v312, %v313
        %v315 = vrot.slane %v202, 2
        %v316 = vsel %vm311, %v313, %v315
        %v317 = vrot.slane %v203, 2
        %v318 = vrot.slane %v204, 2
        %v319 = vsel %vm311, %v317, %v318
        %v320 = vrot.slane %v205, 2
        %v321 = vsel %vm311, %v318, %v320
        %v322 = vrot.slane %v206, 2
        %v323 = vrot.slane %v207, 2
        %v324 = vsel %vm311, %v322, %v323
        %v325 = vrot.slane %v208, 2
        %v326 = vsel %vm311, %v323, %v325
        %v327 = vrot.slane %v209, 2
        %v328 = vrot.slane %v210, 2
        %v329 = vsel %vm311, %v327, %v328
        %v330 = vrot.slane %v211, 2
        %v331 = vsel %vm311, %v328, %v330
        %v332 = vrot.slane %v212, 2
        %v333 = vrot.slane %v213, 2
        %v334 = vsel %vm311, %v332, %v333
        %v335 = vrot.slane %v214, 2
        %v336 = vsel %vm311, %v333, %v335
        %v337 = vrot.slane %v215, 2
        %v338 = vrot.slane %v216, 2
        %v339 = vsel %vm311, %v337, %v338
        %v340 = vrot.slane %v217, 2
        %v341 = vsel %vm311, %v338, %v340
        %v342 = vrot.slane %v218, 2
        %v343 = vrot.slane %v219, 2
        %v344 = vsel %vm311, %v342, %v343
        %v345 = vrot.slane %v220, 2
        %v346 = vsel %vm311, %v343, %v345
        %v347 = vrot.slane %v221, 2
        %v348 = vrot.slane %v222, 2
        %v349 = vsel %vm311, %v347, %v348
        %v350 = vrot.slane %v223, 2
        %v351 = vsel %vm311, %v348, %v350
        %v371 = vrot.slane %v224, 1
        %v372 = vrot.slane %v225, 1
        %v373 = vsel %vm254, %v371, %v372
        %v374 = vrot.slane %v226, 1
        %v375 = vsel %vm254, %v372, %v374
        %v378 = vrot.slane %v224, 2
        %v379 = vrot.slane %v225, 2
        %v380 = vsel %vm311, %v378, %v379
        %v381 = vrot.slane %v226, 2
        %v382 = vsel %vm311, %v379, %v381
        %v388 = vrot.slane %v227, 1
        %v389 = vrot.slane %v228, 1
        %v390 = vsel %vm254, %v388, %v389
        %v391 = vrot.slane %v229, 1
        %v392 = vsel %vm254, %v389, %v391
        %v395 = vrot.slane %v227, 2
        %v396 = vrot.slane %v228, 2
        %v397 = vsel %vm311, %v395, %v396
        %v398 = vrot.slane %v229, 2
        %v399 = vsel %vm311, %v396, %v398
        %v402 = vld [vmem:[%s1] sm:$0xff]
        %v403 = vld [vmem:[%s1 + $0x8] sm:$0xff]
        %v404 = vld [vmem:[%s1 + $0x10] sm:$0xff]
        %v405 = vld [vmem:[%s1 + $0x18] sm:$0xff]
        %v406 = vld [vmem:[%s1 + $0x20] sm:$0xff]
        %v407 = vld [vmem:[%s1 + $0x28] sm:$0xff]
        %v408 = vld [vmem:[%s1 + $0x30] sm:$0xff]
        %v409 = vld [vmem:[%s1 + $0x38] sm:$0xff]
        %v410 = vld [vmem:[%s1 + $0x40] sm:$0xff]
        %v411 = vld [vmem:[%s1 + $0x48] sm:$0xff]
        %v412 = vld [vmem:[%s1 + $0x50] sm:$0xff]
        %v413 = vld [vmem:[%s1 + $0x58] sm:$0xff]
        %v414 = vld [vmem:[%s1 + $0x60] sm:$0xff]
        %v415 = vld [vmem:[%s1 + $0x68] sm:$0xff]
        %v416 = vld [vmem:[%s1 + $0x70] sm:$0xff]
        %v417 = vld [vmem:[%s1 + $0x78] sm:$0xff]
        %v418 = vld [vmem:[%s1 + $0x80] sm:$0xff]
        %v419 = vld [vmem:[%s1 + $0x88] sm:$0xff]
        %v420 = vld [vmem:[%s1 + $0x90] sm:$0xff]
        %v421 = vld [vmem:[%s1 + $0x98] sm:$0xff]
        %v422 = vld [vmem:[%s1 + $0xa0] sm:$0xff]
        %v423 = vld [vmem:[%s1 + $0xa8] sm:$0xff]
        %v424 = vld [vmem:[%s1 + $0xb0] sm:$0xff]
        %v425 = vld [vmem:[%s1 + $0xb8] sm:$0xff]
        %v426 = vld [vmem:[%s1 + $0xc0] sm:$0xff]
        %v427 = vld [vmem:[%s1 + $0xc8] sm:$0xff]
        %v428 = vld [vmem:[%s1 + $0xd0] sm:$0xff]
        %v429 = vld [vmem:[%s1 + $0xd8] sm:$0xff]
        %v430 = vld [vmem:[%s1 + $0xe0] sm:$0xff]
        %v431 = vld [vmem:[%s1 + $0xe8] sm:$0xff]
        %v432 = vld [vmem:[%s1 + $0xf0] sm:$0xff]
        %v433 = vld [vmem:[%s1 + $0xf8] sm:$0xff]
        %v434 = vld [vmem:[%s1 + $0x100] sm:$0xff]
        %v435 = vld [vmem:[%s1 + $0x108] sm:$0xff]
        %v436 = vld [vmem:[%s1 + $0x110] sm:$0xff]
        %v437 = vld [vmem:[%s1 + $0x118] sm:$0xff]
        %v438 = vld [vmem:[%s1 + $0x120] sm:$0xff]
        %v439 = vld [vmem:[%s1 + $0x128] sm:$0xff]
        %v440 = vld [vmem:[%s1 + $0x130] sm:$0xff]
        %v441 = vld [vmem:[%s1 + $0x138] sm:$0xff]
        %v442 = vld [vmem:[%s1 + $0x140] sm:$0xff]
        %v443 = vld [vmem:[%s1 + $0x148] sm:$0xff]
        %v444 = vld [vmem:[%s1 + $0x150] sm:$0xff]
        %v445 = vld [vmem:[%s1 + $0x158] sm:$0xff]
        %v446 = vld [vmem:[%s1 + $0x160] sm:$0xff]
        %v447 = vld [vmem:[%s1 + $0x168] sm:$0xff]
        %v448 = vld [vmem:[%s1 + $0x170] sm:$0xff]
        %v449 = vld [vmem:[%s1 + $0x178] sm:$0xff]
        %v450 = vld [vmem:[%s1 + $0x180] sm:$0xff]
        %v451 = vld [vmem:[%s1 + $0x188] sm:$0xff]
        %v452 = vld [vmem:[%s1 + $0x190] sm:$0xff]
        %v453 = vld [vmem:[%s1 + $0x198] sm:$0xff]
        %v454 = vld [vmem:[%s1 + $0x1a0] sm:$0xff]
        %v455 = vld [vmem:[%s1 + $0x1a8] sm:$0xff]
        %v456 = vld [vmem:[%s1 + $0x1b0] sm:$0xff]
        %v457 = vld [vmem:[%s1 + $0x1b8] sm:$0xff]
        %v458 = vld [vmem:[%s1 + $0x1c0] sm:$0xff]
        %v459 = vld [vmem:[%s1 + $0x1c8] sm:$0xff]
        %v460 = vld [vmem:[%s1 + $0x1d0] sm:$0xff]
        %v461 = vld [vmem:[%s1 + $0x1d8] sm:$0xff]
        %v462 = vld [vmem:[%s1 + $0x1e0] sm:$0xff]
        %v463 = vld [vmem:[%s1 + $0x1e8] sm:$0xff]
        %v464 = vld [vmem:[%s1 + $0x1f0] sm:$0xff]
        %v465 = vld [vmem:[%s1 + $0x1f8] sm:$0xff]
        %v466 = vld [vmem:[%s1 + $0x200] sm:$0xff]
        %v467 = vld [vmem:[%s1 + $0x208] sm:$0xff]
        %v468 = vld [vmem:[%s1 + $0x210] sm:$0xff]
        %v469 = vld [vmem:[%s1 + $0x218] sm:$0xff]
        %v470 = vld [vmem:[%s1 + $0x220] sm:$0xff]
        %v471 = vld [vmem:[%s1 + $0x228] sm:$0xff]
        %v472 = vld [vmem:[%s1 + $0x230] sm:$0xff]
        %v473 = vld [vmem:[%s1 + $0x238] sm:$0xff]
        %v474 = vld [vmem:[%s1 + $0x240] sm:$0xff]
        %v475 = vld [vmem:[%s1 + $0x248] sm:$0xff]
        %v476 = vld [vmem:[%s1 + $0x250] sm:$0xff]
        %v477 = vld [vmem:[%s1 + $0x258] sm:$0xff]
        %v478 = vld [vmem:[%s1 + $0x260] sm:$0xff]
        %v479 = vld [vmem:[%s1 + $0x268] sm:$0xff]
        %v480 = vld [vmem:[%s1 + $0x270] sm:$0xff]
        %v481 = vld [vmem:[%s1 + $0x278] sm:$0xff]
        %v482 = vld [vmem:[%s1 + $0x280] sm:$0xff]
        %v483 = vld [vmem:[%s1 + $0x288] sm:$0xff]
        %v484 = vld [vmem:[%s1 + $0x290] sm:$0xff]
        %v485 = vld [vmem:[%s1 + $0x298] sm:$0xff]
        %v486 = vld [vmem:[%s1 + $0x2a0] sm:$0xff]
        %v487 = vld [vmem:[%s1 + $0x2a8] sm:$0xff]
        %v488 = vld [vmem:[%s1 + $0x2b0] sm:$0xff]
        %v489 = vld [vmem:[%s1 + $0x2b8] sm:$0xff]
        %v490 = vld [vmem:[%s1 + $0x2c0] sm:$0xff]
        %v491 = vld [vmem:[%s1 + $0x2c8] sm:$0xff]
        %v492 = vld [vmem:[%s1 + $0x2d0] sm:$0xff]
        %v493 = vld [vmem:[%s1 + $0x2d8] sm:$0xff]
        %v494 = vld [vmem:[%s1 + $0x2e0] sm:$0xff]
        %v495 = vld [vmem:[%s1 + $0x2e8] sm:$0xff]
        %v496 = vld [vmem:[%s1 + $0x2f0] sm:$0xff]
        %v497 = vld [vmem:[%s1 + $0x2f8] sm:$0xff]
        %v498 = vld [vmem:[%s1 + $0x300] sm:$0xff]
        %v499 = vld [vmem:[%s1 + $0x308] sm:$0xff]
        %v500 = vld [vmem:[%s1 + $0x310] sm:$0xff]
        %v501 = vld [vmem:[%s1 + $0x318] sm:$0xff]
        %v502 = vld [vmem:[%s1 + $0x320] sm:$0xff]
        %v503 = vld [vmem:[%s1 + $0x328] sm:$0xff]
        %v504 = vld [vmem:[%s1 + $0x330] sm:$0xff]
        %v505 = vld [vmem:[%s1 + $0x338] sm:$0xff]
        %v506 = vld [vmem:[%s1 + $0x340] sm:$0xff]
        %v507 = vld [vmem:[%s1 + $0x348] sm:$0xff]
        %v508 = vld [vmem:[%s1 + $0x350] sm:$0xff]
        %v509 = vld [vmem:[%s1 + $0x358] sm:$0xff]
        %v510 = vld [vmem:[%s1 + $0x360] sm:$0xff]
        %v511 = vld [vmem:[%s1 + $0x368] sm:$0xff]
        %v512 = vld [vmem:[%s1 + $0x370] sm:$0xff]
        %v513 = vld [vmem:[%s1 + $0x378] sm:$0xff]
        %v514 = vld [vmem:[%s1 + $0x380] sm:$0xff]
        %v515 = vld [vmem:[%s1 + $0x388] sm:$0xff]
        %v516 = vld [vmem:[%s1 + $0x390] sm:$0xff]
        %v517 = vld [vmem:[%s1 + $0x398] sm:$0xff]
        %v518 = vld [vmem:[%s1 + $0x3a0] sm:$0xff]
        %v519 = vld [vmem:[%s1 + $0x3a8] sm:$0xff]
        %v520 = vld [vmem:[%s1 + $0x3b0] sm:$0xff]
        %v521 = vld [vmem:[%s1 + $0x3b8] sm:$0xff]
        %v522 = vld [vmem:[%s1 + $0x3c0] sm:$0xff]
        %v523 = vld [vmem:[%s1 + $0x3c8] sm:$0xff]
        %v524 = vld [vmem:[%s1 + $0x3d0] sm:$0xff]
        %v525 = vld [vmem:[%s1 + $0x3d8] sm:$0xff]
        %v526 = vld [vmem:[%s1 + $0x3e0] sm:$0xff]
        %v527 = vld [vmem:[%s1 + $0x3e8] sm:$0xff]
        %v528 = vld [vmem:[%s1 + $0x3f0] sm:$0xff]
        %v529 = vld [vmem:[%s1 + $0x3f8] sm:$0xff]
        %v530 = vld [vmem:[%s1 + $0x400] sm:$0xff]
        %v531 = vld [vmem:[%s1 + $0x408] sm:$0xff]
        %v532 = vld [vmem:[%s1 + $0x410] sm:$0xff]
        %v533 = vld [vmem:[%s1 + $0x418] sm:$0xff]
        %v534 = vld [vmem:[%s1 + $0x420] sm:$0xff]
        %v535 = vld [vmem:[%s1 + $0x428] sm:$0xff]
        %v536 = vld [vmem:[%s1 + $0x430] sm:$0xff]
        %v537 = vld [vmem:[%s1 + $0x438] sm:$0xff]
        %v538 = vld [vmem:[%s1 + $0x440] sm:$0xff]
        %v539 = vld [vmem:[%s1 + $0x448] sm:$0xff]
        %v540 = vld [vmem:[%s1 + $0x450] sm:$0xff]
        %v541 = vld [vmem:[%s1 + $0x458] sm:$0xff]
        %v542 = vld [vmem:[%s1 + $0x460] sm:$0xff]
        %v543 = vld [vmem:[%s1 + $0x468] sm:$0xff]
        %v544 = vld [vmem:[%s1 + $0x470] sm:$0xff]
        %v545 = vld [vmem:[%s1 + $0x478] sm:$0xff]
        %546 = vmatprep.subr.mxu0 0.0
        %547 = vmatpush1.msra.mxu0 %v402
        %548 = vmatprep.subr.mxu0 0.0
        %549 = vmatpush1.msra.mxu0 %v403
        %550 = vmatprep.subr.mxu0 0.0
        %551 = vmatpush1.msra.mxu0 %v404
        %552 = vmatprep.subr.mxu0 0.0
        %553 = vmatpush1.msra.mxu0 %v405
        %554 = vmatprep.subr.mxu0 0.0
        %555 = vmatpush1.msra.mxu0 %v406
        %556 = vmatprep.subr.mxu0 0.0
        %557 = vmatpush1.msra.mxu0 %v407
        %558 = vmatprep.subr.mxu0 0.0
        %559 = vmatpush1.msra.mxu0 %v408
        %560 = vmatprep.subr.mxu0 0.0
        %561 = vmatpush1.msra.mxu0 %v409
        %562 = vmatprep.subr.mxu0 0.0
        %563 = vmatpush1.msra.mxu0 %v410
        %564 = vmatprep.subr.mxu0 0.0
        %565 = vmatpush1.msra.mxu0 %v411
        %566 = vmatprep.subr.mxu0 0.0
        %567 = vmatpush1.msra.mxu0 %v412
        %568 = vmatprep.subr.mxu0 0.0
        %569 = vmatpush1.msra.mxu0 %v413
        %570 = vmatprep.subr.mxu0 0.0
        %571 = vmatpush1.msra.mxu0 %v414
        %572 = vmatprep.subr.mxu0 0.0
        %573 = vmatpush1.msra.mxu0 %v415
        %574 = vmatprep.subr.mxu0 0.0
        %575 = vmatpush1.msra.mxu0 %v416
        %576 = vmatprep.subr.mxu0 0.0
        %577 = vmatpush1.msra.mxu0 %v417
        %578 = vmatprep.subr.mxu0 0.0
        %579 = vmatpush1.msra.mxu0 %v418
        %580 = vmatprep.subr.mxu0 0.0
        %581 = vmatpush1.msra.mxu0 %v419
        %582 = vmatprep.subr.mxu0 0.0
        %583 = vmatpush1.msra.mxu0 %v420
        %584 = vmatprep.subr.mxu0 0.0
        %585 = vmatpush1.msra.mxu0 %v421
        %586 = vmatprep.subr.mxu0 0.0
        %587 = vmatpush1.msra.mxu0 %v422
        %588 = vmatprep.subr.mxu0 0.0
        %589 = vmatpush1.msra.mxu0 %v423
        %590 = vmatprep.subr.mxu0 0.0
        %591 = vmatpush1.msra.mxu0 %v424
        %592 = vmatprep.subr.mxu0 0.0
        %593 = vmatpush1.msra.mxu0 %v425
        %594 = vmatprep.subr.mxu0 0.0
        %595 = vmatpush1.msra.mxu0 %v426
        %596 = vmatprep.subr.mxu0 0.0
        %597 = vmatpush1.msra.mxu0 %v427
        %598 = vmatprep.subr.mxu0 0.0
        %599 = vmatpush1.msra.mxu0 %v428
        %600 = vmatprep.subr.mxu0 0.0
        %601 = vmatpush1.msra.mxu0 %v429
        %602 = vmatprep.subr.mxu0 0.0
        %603 = vmatpush1.msra.mxu0 %v430
        %604 = vmatprep.subr.mxu0 0.0
        %605 = vmatpush1.msra.mxu0 %v431
        %606 = vmatprep.subr.mxu0 0.0
        %607 = vmatpush1.msra.mxu0 %v432
        %608 = vmatprep.subr.mxu0 0.0
        %609 = vmatpush1.msra.mxu0 %v433
        %610 = vmatprep.mubr.f32.mxu0 %v257
        %611 = vmatmul.mubr.f32.gmra.mrb[0].mxu0 %v200
        %v612 = vpop.f32.mrb[0].mxu0
        %v613 = vadd.f32 0.0, %v612
        %v614 = vpop.f32.mrb[0].mxu0
        %615 = vmatprep.mubr.f32.mxu0 %v259
        %616 = vmatmul.mubr.f32.gmra.mrb[0].mxu0 %v201
        %v617 = vpop.f32.mrb[0].mxu0
        %v618 = vadd.f32 0.0, %v617
        %v619 = vpop.f32.mrb[0].mxu0
        %620 = vmatprep.mubr.f32.mxu0 %v262
        %621 = vmatmul.mubr.f32.gmra.mrb[0].mxu0 %v203
        %v622 = vpop.f32.mrb[0].mxu0
        %v623 = vadd.f32 0.0, %v622
        %v624 = vpop.f32.mrb[0].mxu0
        %625 = vmatprep.mubr.f32.mxu0 %v264
        %626 = vmatmul.mubr.f32.gmra.mrb[0].mxu0 %v204
        %v627 = vpop.f32.mrb[0].mxu0
        %v628 = vadd.f32 0.0, %v627
        %v629 = vpop.f32.mrb[0].mxu0
        %630 = vmatprep.mubr.f32.mxu0 %v267
        %631 = vmatmul.mubr.f32.gmra.mrb[0].mxu0 %v206
        %v632 = vpop.f32.mrb[0].mxu0
        %v633 = vadd.f32 0.0, %v632
        %v634 = vpop.f32.mrb[0].mxu0
        %635 = vmatprep.mubr.f32.mxu0 %v269
        %636 = vmatmul.mubr.f32.gmra.mrb[0].mxu0 %v207
        %v637 = vpop.f32.mrb[0].mxu0
        %v638 = vadd.f32 0.0, %v637
        %v639 = vpop.f32.mrb[0].mxu0
        %640 = vmatprep.mubr.f32.mxu0 %v272
        %641 = vmatmul.mubr.f32.gmra.mrb[0].mxu0 %v209
        %v642 = vpop.f32.mrb[0].mxu0
        %v643 = vadd.f32 0.0, %v642
        %v644 = vpop.f32.mrb[0].mxu0
        %645 = vmatprep.mubr.f32.mxu0 %v274
        %646 = vmatmul.mubr.f32.gmra.mrb[0].mxu0 %v210
        %v647 = vpop.f32.mrb[0].mxu0
        %v648 = vadd.f32 0.0, %v647
        %v649 = vpop.f32.mrb[0].mxu0
        %650 = vmatprep.mubr.f32.mxu0 %v277
        %651 = vmatmul.mubr.f32.gmra.mrb[0].mxu0 %v212
        %v652 = vpop.f32.mrb[0].mxu0
        %v653 = vadd.f32 0.0, %v652
        %v654 = vpop.f32.mrb[0].mxu0
        %655 = vmatprep.mubr.f32.mxu0 %v279
        %656 = vmatmul.mubr.f32.gmra.mrb[0].mxu0 %v213
        %v657 = vpop.f32.mrb[0].mxu0
        %v658 = vadd.f32 0.0, %v657
        %v659 = vpop.f32.mrb[0].mxu0
        %660 = vmatprep.mubr.f32.mxu0 %v282
        %661 = vmatmul.mubr.f32.gmra.mrb[0].mxu0 %v215
        %v662 = vpop.f32.mrb[0].mxu0
        %v663 = vadd.f32 0.0, %v662
        %v664 = vpop.f32.mrb[0].mxu0
        %665 = vmatprep.mubr.f32.mxu0 %v284
        %666 = vmatmul.mubr.f32.gmra.mrb[0].mxu0 %v216
        %v667 = vpop.f32.mrb[0].mxu0
        %v668 = vadd.f32 0.0, %v667
        %v669 = vpop.f32.mrb[0].mxu0
        %670 = vmatprep.mubr.f32.mxu0 %v287
        %671 = vmatmul.mubr.f32.gmra.mrb[0].mxu0 %v218
        %v672 = vpop.f32.mrb[0].mxu0
        %v673 = vadd.f32 0.0, %v672
        %v674 = vpop.f32.mrb[0].mxu0
        %675 = vmatprep.mubr.f32.mxu0 %v289
        %676 = vmatmul.mubr.f32.gmra.mrb[0].mxu0 %v219
        %v677 = vpop.f32.mrb[0].mxu0
        %v678 = vadd.f32 0.0, %v677
        %v679 = vpop.f32.mrb[0].mxu0
        %680 = vmatprep.mubr.f32.mxu0 %v292
        %681 = vmatmul.mubr.f32.gmra.mrb[0].mxu0 %v221
        %v682 = vpop.f32.mrb[0].mxu0
        %v683 = vadd.f32 0.0, %v682
        %v684 = vpop.f32.mrb[0].mxu0
        %685 = vmatprep.mubr.f32.mxu0 %v294
        %686 = vmatmul.mubr.f32.gmra.mrb[0].mxu0 %v222
        %v687 = vpop.f32.mrb[0].mxu0
        %v688 = vadd.f32 0.0, %v687
        %v689 = vpop.f32.mrb[0].mxu0
        %690 = vdwg.mxu0
        %691 = vmatprep.subr.mxu0 0.0
        %692 = vmatpush1.msra.mxu0 %v434
        %693 = vmatprep.subr.mxu0 0.0
        %694 = vmatpush1.msra.mxu0 %v435
        %695 = vmatprep.subr.mxu0 0.0
        %696 = vmatpush1.msra.mxu0 %v436
        %697 = vmatprep.subr.mxu0 0.0
        %698 = vmatpush1.msra.mxu0 %v437
        %699 = vmatprep.subr.mxu0 0.0
        %700 = vmatpush1.msra.mxu0 %v438
        %701 = vmatprep.subr.mxu0 0.0
        %702 = vmatpush1.msra.mxu0 %v439
        %703 = vmatprep.subr.mxu0 0.0
        %704 = vmatpush1.msra.mxu0 %v440
        %705 = vmatprep.subr.mxu0 0.0
        %706 = vmatpush1.msra.mxu0 %v441
        %707 = vmatprep.subr.mxu0 0.0
        %708 = vmatpush1.msra.mxu0 %v442
        %709 = vmatprep.subr.mxu0 0.0
        %710 = vmatpush1.msra.mxu0 %v443
        %711 = vmatprep.subr.mxu0 0.0
        %712 = vmatpush1.msra.mxu0 %v444
        %713 = vmatprep.subr.mxu0 0.0
        %714 = vmatpush1.msra.mxu0 %v445
        %715 = vmatprep.subr.mxu0 0.0
        %716 = vmatpush1.msra.mxu0 %v446
        %717 = vmatprep.subr.mxu0 0.0
        %718 = vmatpush1.msra.mxu0 %v447
        %719 = vmatprep.subr.mxu0 0.0
        %720 = vmatpush1.msra.mxu0 %v448
        %721 = vmatprep.subr.mxu0 0.0
        %722 = vmatpush1.msra.mxu0 %v449
        %723 = vmatprep.subr.mxu0 0.0
        %724 = vmatpush1.msra.mxu0 %v450
        %725 = vmatprep.subr.mxu0 0.0
        %726 = vmatpush1.msra.mxu0 %v451
        %727 = vmatprep.subr.mxu0 0.0
        %728 = vmatpush1.msra.mxu0 %v452
        %729 = vmatprep.subr.mxu0 0.0
        %730 = vmatpush1.msra.mxu0 %v453
        %731 = vmatprep.subr.mxu0 0.0
        %732 = vmatpush1.msra.mxu0 %v454
        %733 = vmatprep.subr.mxu0 0.0
        %734 = vmatpush1.msra.mxu0 %v455
        %735 = vmatprep.subr.mxu0 0.0
        %736 = vmatpush1.msra.mxu0 %v456
        %737 = vmatprep.subr.mxu0 0.0
        %738 = vmatpush1.msra.mxu0 %v457
        %739 = vmatprep.subr.mxu0 0.0
        %740 = vmatpush1.msra.mxu0 %v458
        %741 = vmatprep.subr.mxu0 0.0
        %742 = vmatpush1.msra.mxu0 %v459
        %743 = vmatprep.subr.mxu0 0.0
        %744 = vmatpush1.msra.mxu0 %v460
        %745 = vmatprep.subr.mxu0 0.0
        %746 = vmatpush1.msra.mxu0 %v461
        %747 = vmatprep.subr.mxu0 0.0
        %748 = vmatpush1.msra.mxu0 %v462
        %749 = vmatprep.subr.mxu0 0.0
        %750 = vmatpush1.msra.mxu0 %v463
        %751 = vmatprep.subr.mxu0 0.0
        %752 = vmatpush1.msra.mxu0 %v464
        %753 = vmatprep.subr.mxu0 0.0
        %754 = vmatpush1.msra.mxu0 %v465
        %755 = vmatprep.mubr.f32.mxu0 %v203
        %756 = vmatmul.mubr.f32.gmra.mrb[0].mxu0 %v314
        %v757 = vpop.f32.mrb[0].mxu0
        %v758 = vadd.f32 %v613, %v757
        %v759 = vpop.f32.mrb[0].mxu0
        %760 = vmatprep.mubr.f32.mxu0 %v204
        %761 = vmatmul.mubr.f32.gmra.mrb[0].mxu0 %v316
        %v762 = vpop.f32.mrb[0].mxu0
        %v763 = vadd.f32 %v618, %v762
        %v764 = vpop.f32.mrb[0].mxu0
        %765 = vmatprep.mubr.f32.mxu0 %v206
        %766 = vmatmul.mubr.f32.gmra.mrb[0].mxu0 %v319
        %v767 = vpop.f32.mrb[0].mxu0
        %v768 = vadd.f32 %v623, %v767
        %v769 = vpop.f32.mrb[0].mxu0
        %770 = vmatprep.mubr.f32.mxu0 %v207
        %771 = vmatmul.mubr.f32.gmra.mrb[0].mxu0 %v321
        %v772 = vpop.f32.mrb[0].mxu0
        %v773 = vadd.f32 %v628, %v772
        %v774 = vpop.f32.mrb[0].mxu0
        %775 = vmatprep.mubr.f32.mxu0 %v209
        %776 = vmatmul.mubr.f32.gmra.mrb[0].mxu0 %v324
        %v777 = vpop.f32.mrb[0].mxu0
        %v778 = vadd.f32 %v633, %v777
        %v779 = vpop.f32.mrb[0].mxu0
        %780 = vmatprep.mubr.f32.mxu0 %v210
        %781 = vmatmul.mubr.f32.gmra.mrb[0].mxu0 %v326
        %v782 = vpop.f32.mrb[0].mxu0
        %v783 = vadd.f32 %v638, %v782
        %v784 = vpop.f32.mrb[0].mxu0
        %785 = vmatprep.mubr.f32.mxu0 %v212
        %786 = vmatmul.mubr.f32.gmra.mrb[0].mxu0 %v329
        %v787 = vpop.f32.mrb[0].mxu0
        %v788 = vadd.f32 %v643, %v787
        %v789 = vpop.f32.mrb[0].mxu0
        %790 = vmatprep.mubr.f32.mxu0 %v213
        %791 = vmatmul.mubr.f32.gmra.mrb[0].mxu0 %v331
        %v792 = vpop.f32.mrb[0].mxu0
        %v793 = vadd.f32 %v648, %v792
        %v794 = vpop.f32.mrb[0].mxu0
        %795 = vmatprep.mubr.f32.mxu0 %v215
        %796 = vmatmul.mubr.f32.gmra.mrb[0].mxu0 %v334
        %v797 = vpop.f32.mrb[0].mxu0
        %v798 = vadd.f32 %v653, %v797
        %v799 = vpop.f32.mrb[0].mxu0
        %800 = vmatprep.mubr.f32.mxu0 %v216
        %801 = vmatmul.mubr.f32.gmra.mrb[0].mxu0 %v336
        %v802 = vpop.f32.mrb[0].mxu0
        %v803 = vadd.f32 %v658, %v802
        %v804 = vpop.f32.mrb[0].mxu0
        %805 = vmatprep.mubr.f32.mxu0 %v218
        %806 = vmatmul.mubr.f32.gmra.mrb[0].mxu0 %v339
        %v807 = vpop.f32.mrb[0].mxu0
        %v808 = vadd.f32 %v663, %v807
        %v809 = vpop.f32.mrb[0].mxu0
        %810 = vmatprep.mubr.f32.mxu0 %v219
        %811 = vmatmul.mubr.f32.gmra.mrb[0].mxu0 %v341
        %v812 = vpop.f32.mrb[0].mxu0
        %v813 = vadd.f32 %v668, %v812
        %v814 = vpop.f32.mrb[0].mxu0
        %815 = vmatprep.mubr.f32.mxu0 %v221
        %816 = vmatmul.mubr.f32.gmra.mrb[0].mxu0 %v344
        %v817 = vpop.f32.mrb[0].mxu0
        %v818 = vadd.f32 %v673, %v817
        %v819 = vpop.f32.mrb[0].mxu0
        %820 = vmatprep.mubr.f32.mxu0 %v222
        %821 = vmatmul.mubr.f32.gmra.mrb[0].mxu0 %v346
        %v822 = vpop.f32.mrb[0].mxu0
        %v823 = vadd.f32 %v678, %v822
        %v824 = vpop.f32.mrb[0].mxu0
        %825 = vmatprep.mubr.f32.mxu0 %v224
        %826 = vmatmul.mubr.f32.gmra.mrb[0].mxu0 %v349
        %v827 = vpop.f32.mrb[0].mxu0
        %v828 = vadd.f32 %v683, %v827
        %v829 = vpop.f32.mrb[0].mxu0
        %830 = vmatprep.mubr.f32.mxu0 %v225
        %831 = vmatmul.mubr.f32.gmra.mrb[0].mxu0 %v351
        %v832 = vpop.f32.mrb[0].mxu0
        %v833 = vadd.f32 %v688, %v832
        %v834 = vpop.f32.mrb[0].mxu0
        %835 = vdwg.mxu0
        %836 = vmatprep.subr.mxu0 0.0
        %837 = vmatpush1.msra.mxu0 %v466
        %838 = vmatprep.subr.mxu0 0.0
        %839 = vmatpush1.msra.mxu0 %v467
        %840 = vmatprep.subr.mxu0 0.0
        %841 = vmatpush1.msra.mxu0 %v468
        %842 = vmatprep.subr.mxu0 0.0
        %843 = vmatpush1.msra.mxu0 %v469
        %844 = vmatprep.subr.mxu0 0.0
        %845 = vmatpush1.msra.mxu0 %v470
        %846 = vmatprep.subr.mxu0 0.0
        %847 = vmatpush1.msra.mxu0 %v471
        %848 = vmatprep.subr.mxu0 0.0
        %849 = vmatpush1.msra.mxu0 %v472
        %850 = vmatprep.subr.mxu0 0.0
        %851 = vmatpush1.msra.mxu0 %v473
        %852 = vmatprep.subr.mxu0 0.0
        %853 = vmatpush1.msra.mxu0 %v474
        %854 = vmatprep.subr.mxu0 0.0
        %855 = vmatpush1.msra.mxu0 %v475
        %856 = vmatprep.subr.mxu0 0.0
        %857 = vmatpush1.msra.mxu0 %v476
        %858 = vmatprep.subr.mxu0 0.0
        %859 = vmatpush1.msra.mxu0 %v477
        %860 = vmatprep.subr.mxu0 0.0
        %861 = vmatpush1.msra.mxu0 %v478
        %862 = vmatprep.subr.mxu0 0.0
        %863 = vmatpush1.msra.mxu0 %v479
        %864 = vmatprep.subr.mxu0 0.0
        %865 = vmatpush1.msra.mxu0 %v480
        %866 = vmatprep.subr.mxu0 0.0
        %867 = vmatpush1.msra.mxu0 %v481
        %868 = vmatprep.subr.mxu0 0.0
        %869 = vmatpush1.msra.mxu0 %v482
        %870 = vmatprep.subr.mxu0 0.0
        %871 = vmatpush1.msra.mxu0 %v483
        %872 = vmatprep.subr.mxu0 0.0
        %873 = vmatpush1.msra.mxu0 %v484
        %874 = vmatprep.subr.mxu0 0.0
        %875 = vmatpush1.msra.mxu0 %v485
        %876 = vmatprep.subr.mxu0 0.0
        %877 = vmatpush1.msra.mxu0 %v486
        %878 = vmatprep.subr.mxu0 0.0
        %879 = vmatpush1.msra.mxu0 %v487
        %880 = vmatprep.subr.mxu0 0.0
        %881 = vmatpush1.msra.mxu0 %v488
        %882 = vmatprep.subr.mxu0 0.0
        %883 = vmatpush1.msra.mxu0 %v489
        %884 = vmatprep.subr.mxu0 0.0
        %885 = vmatpush1.msra.mxu0 %v490
        %886 = vmatprep.subr.mxu0 0.0
        %887 = vmatpush1.msra.mxu0 %v491
        %888 = vmatprep.subr.mxu0 0.0
        %889 = vmatpush1.msra.mxu0 %v492
        %890 = vmatprep.subr.mxu0 0.0
        %891 = vmatpush1.msra.mxu0 %v493
        %892 = vmatprep.subr.mxu0 0.0
        %893 = vmatpush1.msra.mxu0 %v494
        %894 = vmatprep.subr.mxu0 0.0
        %895 = vmatpush1.msra.mxu0 %v495
        %896 = vmatprep.subr.mxu0 0.0
        %897 = vmatpush1.msra.mxu0 %v496
        %898 = vmatprep.subr.mxu0 0.0
        %899 = vmatpush1.msra.mxu0 %v497
        %900 = vmatprep.mubr.f32.mxu0 %v319
        %901 = vmatmul.mubr.f32.gmra.mrb[0].mxu0 %v262
        %v902 = vpop.f32.mrb[0].mxu0
        %v903 = vadd.f32 %v758, %v902
        %v904 = vpop.f32.mrb[0].mxu0
        %905 = vmatprep.mubr.f32.mxu0 %v321
        %906 = vmatmul.mubr.f32.gmra.mrb[0].mxu0 %v264
        %v907 = vpop.f32.mrb[0].mxu0
        %v908 = vadd.f32 %v763, %v907
        %v909 = vpop.f32.mrb[0].mxu0
        %910 = vmatprep.mubr.f32.mxu0 %v324
        %911 = vmatmul.mubr.f32.gmra.mrb[0].mxu0 %v267
        %v912 = vpop.f32.mrb[0].mxu0
        %v913 = vadd.f32 %v768, %v912
        %v914 = vpop.f32.mrb[0].mxu0
        %915 = vmatprep.mubr.f32.mxu0 %v326
        %916 = vmatmul.mubr.f32.gmra.mrb[0].mxu0 %v269
        %v917 = vpop.f32.mrb[0].mxu0
        %v918 = vadd.f32 %v773, %v917
        %v919 = vpop.f32.mrb[0].mxu0
        %920 = vmatprep.mubr.f32.mxu0 %v329
        %921 = vmatmul.mubr.f32.gmra.mrb[0].mxu0 %v272
        %v922 = vpop.f32.mrb[0].mxu0
        %v923 = vadd.f32 %v778, %v922
        %v924 = vpop.f32.mrb[0].mxu0
        %925 = vmatprep.mubr.f32.mxu0 %v331
        %926 = vmatmul.mubr.f32.gmra.mrb[0].mxu0 %v274
        %v927 = vpop.f32.mrb[0].mxu0
        %v928 = vadd.f32 %v783, %v927
        %v929 = vpop.f32.mrb[0].mxu0
        %930 = vmatprep.mubr.f32.mxu0 %v334
        %931 = vmatmul.mubr.f32.gmra.mrb[0].mxu0 %v277
        %v932 = vpop.f32.mrb[0].mxu0
        %v933 = vadd.f32 %v788, %v932
        %v934 = vpop.f32.mrb[0].mxu0
        %935 = vmatprep.mubr.f32.mxu0 %v336
        %936 = vmatmul.mubr.f32.gmra.mrb[0].mxu0 %v279
        %v937 = vpop.f32.mrb[0].mxu0
        %v938 = vadd.f32 %v793, %v937
        %v939 = vpop.f32.mrb[0].mxu0
        %940 = vmatprep.mubr.f32.mxu0 %v339
        %941 = vmatmul.mubr.f32.gmra.mrb[0].mxu0 %v282
        %v942 = vpop.f32.mrb[0].mxu0
        %v943 = vadd.f32 %v798, %v942
        %v944 = vpop.f32.mrb[0].mxu0
        %945 = vmatprep.mubr.f32.mxu0 %v341
        %946 = vmatmul.mubr.f32.gmra.mrb[0].mxu0 %v284
        %v947 = vpop.f32.mrb[0].mxu0
        %v948 = vadd.f32 %v803, %v947
        %v949 = vpop.f32.mrb[0].mxu0
        %950 = vmatprep.mubr.f32.mxu0 %v344
        %951 = vmatmul.mubr.f32.gmra.mrb[0].mxu0 %v287
        %v952 = vpop.f32.mrb[0].mxu0
        %v953 = vadd.f32 %v808, %v952
        %v954 = vpop.f32.mrb[0].mxu0
        %955 = vmatprep.mubr.f32.mxu0 %v346
        %956 = vmatmul.mubr.f32.gmra.mrb[0].mxu0 %v289
        %v957 = vpop.f32.mrb[0].mxu0
        %v958 = vadd.f32 %v813, %v957
        %v959 = vpop.f32.mrb[0].mxu0
        %960 = vmatprep.mubr.f32.mxu0 %v349
        %961 = vmatmul.mubr.f32.gmra.mrb[0].mxu0 %v292
        %v962 = vpop.f32.mrb[0].mxu0
        %v963 = vadd.f32 %v818, %v962
        %v964 = vpop.f32.mrb[0].mxu0
        %965 = vmatprep.mubr.f32.mxu0 %v351
        %966 = vmatmul.mubr.f32.gmra.mrb[0].mxu0 %v294
        %v967 = vpop.f32.mrb[0].mxu0
        %v968 = vadd.f32 %v823, %v967
        %v969 = vpop.f32.mrb[0].mxu0
        %970 = vmatprep.mubr.f32.mxu0 %v380
        %971 = vmatmul.mubr.f32.gmra.mrb[0].mxu0 %v373
        %v972 = vpop.f32.mrb[0].mxu0
        %v973 = vadd.f32 %v828, %v972
        %v974 = vpop.f32.mrb[0].mxu0
        %975 = vmatprep.mubr.f32.mxu0 %v382
        %976 = vmatmul.mubr.f32.gmra.mrb[0].mxu0 %v375
        %v977 = vpop.f32.mrb[0].mxu0
        %v978 = vadd.f32 %v833, %v977
        %v979 = vpop.f32.mrb[0].mxu0
        %980 = vdwg.mxu0
        %981 = vmatprep.subr.mxu0 0.0
        %982 = vmatpush1.msra.mxu0 %v498
        %983 = vmatprep.subr.mxu0 0.0
        %984 = vmatpush1.msra.mxu0 %v499
        %985 = vmatprep.subr.mxu0 0.0
        %986 = vmatpush1.msra.mxu0 %v500
        %987 = vmatprep.subr.mxu0 0.0
        %988 = vmatpush1.msra.mxu0 %v501
        %989 = vmatprep.subr.mxu0 0.0
        %990 = vmatpush1.msra.mxu0 %v502
        %991 = vmatprep.subr.mxu0 0.0
        %992 = vmatpush1.msra.mxu0 %v503
        %993 = vmatprep.subr.mxu0 0.0
        %994 = vmatpush1.msra.mxu0 %v504
        %995 = vmatprep.subr.mxu0 0.0
        %996 = vmatpush1.msra.mxu0 %v505
        %997 = vmatprep.subr.mxu0 0.0
        %998 = vmatpush1.msra.mxu0 %v506
        %999 = vmatprep.subr.mxu0 0.0
        %1000 = vmatpush1.msra.mxu0 %v507
        %1001 = vmatprep.subr.mxu0 0.0
        %1002 = vmatpush1.msra.mxu0 %v508
        %1003 = vmatprep.subr.mxu0 0.0
        %1004 = vmatpush1.msra.mxu0 %v509
        %1005 = vmatprep.subr.mxu0 0.0
        %1006 = vmatpush1.msra.mxu0 %v510
        %1007 = vmatprep.subr.mxu0 0.0
        %1008 = vmatpush1.msra.mxu0 %v511
        %1009 = vmatprep.subr.mxu0 0.0
        %1010 = vmatpush1.msra.mxu0 %v512
        %1011 = vmatprep.subr.mxu0 0.0
        %1012 = vmatpush1.msra.mxu0 %v513
        %1013 = vmatprep.subr.mxu0 0.0
        %1014 = vmatpush1.msra.mxu0 %v514
        %1015 = vmatprep.subr.mxu0 0.0
        %1016 = vmatpush1.msra.mxu0 %v515
        %1017 = vmatprep.subr.mxu0 0.0
        %1018 = vmatpush1.msra.mxu0 %v516
        %1019 = vmatprep.subr.mxu0 0.0
        %1020 = vmatpush1.msra.mxu0 %v517
        %1021 = vmatprep.subr.mxu0 0.0
        %1022 = vmatpush1.msra.mxu0 %v518
        %1023 = vmatprep.subr.mxu0 0.0
        %1024 = vmatpush1.msra.mxu0 %v519
        %1025 = vmatprep.subr.mxu0 0.0
        %1026 = vmatpush1.msra.mxu0 %v520
        %1027 = vmatprep.subr.mxu0 0.0
        %1028 = vmatpush1.msra.mxu0 %v521
        %1029 = vmatprep.subr.mxu0 0.0
        %1030 = vmatpush1.msra.mxu0 %v522
        %1031 = vmatprep.subr.mxu0 0.0
        %1032 = vmatpush1.msra.mxu0 %v523
        %1033 = vmatprep.subr.mxu0 0.0
        %1034 = vmatpush1.msra.mxu0 %v524
        %1035 = vmatprep.subr.mxu0 0.0
        %1036 = vmatpush1.msra.mxu0 %v525
        %1037 = vmatprep.subr.mxu0 0.0
        %1038 = vmatpush1.msra.mxu0 %v526
        %1039 = vmatprep.subr.mxu0 0.0
        %1040 = vmatpush1.msra.mxu0 %v527
        %1041 = vmatprep.subr.mxu0 0.0
        %1042 = vmatpush1.msra.mxu0 %v528
        %1043 = vmatprep.subr.mxu0 0.0
        %1044 = vmatpush1.msra.mxu0 %v529
        %1045 = vmatprep.mubr.f32.mxu0 %v267
        %1046 = vmatmul.mubr.f32.gmra.mrb[0].mxu0 %v206
        %v1047 = vpop.f32.mrb[0].mxu0
        %v1048 = vadd.f32 %v903, %v1047
        %v1049 = vpop.f32.mrb[0].mxu0
        %1050 = vmatprep.mubr.f32.mxu0 %v269
        %1051 = vmatmul.mubr.f32.gmra.mrb[0].mxu0 %v207
        %v1052 = vpop.f32.mrb[0].mxu0
        %v1053 = vadd.f32 %v908, %v1052
        %v1054 = vpop.f32.mrb[0].mxu0
        %1055 = vmatprep.mubr.f32.mxu0 %v272
        %1056 = vmatmul.mubr.f32.gmra.mrb[0].mxu0 %v209
        %v1057 = vpop.f32.mrb[0].mxu0
        %v1058 = vadd.f32 %v913, %v1057
        %v1059 = vpop.f32.mrb[0].mxu0
        %1060 = vmatprep.mubr.f32.mxu0 %v274
        %1061 = vmatmul.mubr.f32.gmra.mrb[0].mxu0 %v210
        %v1062 = vpop.f32.mrb[0].mxu0
        %v1063 = vadd.f32 %v918, %v1062
        %v1064 = vpop.f32.mrb[0].mxu0
        %1065 = vmatprep.mubr.f32.mxu0 %v277
        %1066 = vmatmul.mubr.f32.gmra.mrb[0].mxu0 %v212
        %v1067 = vpop.f32.mrb[0].mxu0
        %v1068 = vadd.f32 %v923, %v1067
        %v1069 = vpop.f32.mrb[0].mxu0
        %1070 = vmatprep.mubr.f32.mxu0 %v279
        %1071 = vmatmul.mubr.f32.gmra.mrb[0].mxu0 %v213
        %v1072 = vpop.f32.mrb[0].mxu0
        %v1073 = vadd.f32 %v928, %v1072
        %v1074 = vpop.f32.mrb[0].mxu0
        %1075 = vmatprep.mubr.f32.mxu0 %v282
        %1076 = vmatmul.mubr.f32.gmra.mrb[0].mxu0 %v215
        %v1077 = vpop.f32.mrb[0].mxu0
        %v1078 = vadd.f32 %v933, %v1077
        %v1079 = vpop.f32.mrb[0].mxu0
        %1080 = vmatprep.mubr.f32.mxu0 %v284
        %1081 = vmatmul.mubr.f32.gmra.mrb[0].mxu0 %v216
        %v1082 = vpop.f32.mrb[0].mxu0
        %v1083 = vadd.f32 %v938, %v1082
        %v1084 = vpop.f32.mrb[0].mxu0
        %1085 = vmatprep.mubr.f32.mxu0 %v287
        %1086 = vmatmul.mubr.f32.gmra.mrb[0].mxu0 %v218
        %v1087 = vpop.f32.mrb[0].mxu0
        %v1088 = vadd.f32 %v943, %v1087
        %v1089 = vpop.f32.mrb[0].mxu0
        %1090 = vmatprep.mubr.f32.mxu0 %v289
        %1091 = vmatmul.mubr.f32.gmra.mrb[0].mxu0 %v219
        %v1092 = vpop.f32.mrb[0].mxu0
        %v1093 = vadd.f32 %v948, %v1092
        %v1094 = vpop.f32.mrb[0].mxu0
        %1095 = vmatprep.mubr.f32.mxu0 %v292
        %1096 = vmatmul.mubr.f32.gmra.mrb[0].mxu0 %v221
        %v1097 = vpop.f32.mrb[0].mxu0
        %v1098 = vadd.f32 %v953, %v1097
        %v1099 = vpop.f32.mrb[0].mxu0
        %1100 = vmatprep.mubr.f32.mxu0 %v294
        %1101 = vmatmul.mubr.f32.gmra.mrb[0].mxu0 %v222
        %v1102 = vpop.f32.mrb[0].mxu0
        %v1103 = vadd.f32 %v958, %v1102
        %v1104 = vpop.f32.mrb[0].mxu0
        %1105 = vmatprep.mubr.f32.mxu0 %v373
        %1106 = vmatmul.mubr.f32.gmra.mrb[0].mxu0 %v224
        %v1107 = vpop.f32.mrb[0].mxu0
        %v1108 = vadd.f32 %v963, %v1107
        %v1109 = vpop.f32.mrb[0].mxu0
        %1110 = vmatprep.mubr.f32.mxu0 %v375
        %1111 = vmatmul.mubr.f32.gmra.mrb[0].mxu0 %v225
        %v1112 = vpop.f32.mrb[0].mxu0
        %v1113 = vadd.f32 %v968, %v1112
        %v1114 = vpop.f32.mrb[0].mxu0
        %1115 = vmatprep.mubr.f32.mxu0 %v390
        %1116 = vmatmul.mubr.f32.gmra.mrb[0].mxu0 %v227
        %v1117 = vpop.f32.mrb[0].mxu0
        %v1118 = vadd.f32 %v973, %v1117
        %v1119 = vpop.f32.mrb[0].mxu0
        %1120 = vmatprep.mubr.f32.mxu0 %v392
        %1121 = vmatmul.mubr.f32.gmra.mrb[0].mxu0 %v228
        %v1122 = vpop.f32.mrb[0].mxu0
        %v1123 = vadd.f32 %v978, %v1122
        %v1124 = vpop.f32.mrb[0].mxu0
        %1125 = vdwg.mxu0
        %1126 = vmatprep.subr.mxu0 0.0
        %1127 = vmatpush1.msra.mxu0 %v530
        %1128 = vmatprep.subr.mxu0 0.0
        %1129 = vmatpush1.msra.mxu0 %v531
        %1130 = vmatprep.subr.mxu0 0.0
        %1131 = vmatpush1.msra.mxu0 %v532
        %1132 = vmatprep.subr.mxu0 0.0
        %1133 = vmatpush1.msra.mxu0 %v533
        %1134 = vmatprep.subr.mxu0 0.0
        %1135 = vmatpush1.msra.mxu0 %v534
        %1136 = vmatprep.subr.mxu0 0.0
        %1137 = vmatpush1.msra.mxu0 %v535
        %1138 = vmatprep.subr.mxu0 0.0
        %1139 = vmatpush1.msra.mxu0 %v536
        %1140 = vmatprep.subr.mxu0 0.0
        %1141 = vmatpush1.msra.mxu0 %v537
        %1142 = vmatprep.subr.mxu0 0.0
        %1143 = vmatpush1.msra.mxu0 %v538
        %1144 = vmatprep.subr.mxu0 0.0
        %1145 = vmatpush1.msra.mxu0 %v539
        %1146 = vmatprep.subr.mxu0 0.0
        %1147 = vmatpush1.msra.mxu0 %v540
        %1148 = vmatprep.subr.mxu0 0.0
        %1149 = vmatpush1.msra.mxu0 %v541
        %1150 = vmatprep.subr.mxu0 0.0
        %1151 = vmatpush1.msra.mxu0 %v542
        %1152 = vmatprep.subr.mxu0 0.0
        %1153 = vmatpush1.msra.mxu0 %v543
        %1154 = vmatprep.subr.mxu0 0.0
        %1155 = vmatpush1.msra.mxu0 %v544
        %1156 = vmatprep.subr.mxu0 0.0
        %1157 = vmatpush1.msra.mxu0 %v545
        %1158 = vmatprep.subr.mxu0 0.0
        %1159 = vmatpush1.msra.mxu0 0.0
        %1160 = vmatprep.subr.mxu0 0.0
        %1161 = vmatpush1.msra.mxu0 0.0
        %1162 = vmatprep.subr.mxu0 0.0
        %1163 = vmatpush1.msra.mxu0 0.0
        %1164 = vmatprep.subr.mxu0 0.0
        %1165 = vmatpush1.msra.mxu0 0.0
        %1166 = vmatprep.subr.mxu0 0.0
        %1167 = vmatpush1.msra.mxu0 0.0
        %1168 = vmatprep.subr.mxu0 0.0
        %1169 = vmatpush1.msra.mxu0 0.0
        %1170 = vmatprep.subr.mxu0 0.0
        %1171 = vmatpush1.msra.mxu0 0.0
        %1172 = vmatprep.subr.mxu0 0.0
        %1173 = vmatpush1.msra.mxu0 0.0
        %1174 = vmatprep.subr.mxu0 0.0
        %1175 = vmatpush1.msra.mxu0 0.0
        %1176 = vmatprep.subr.mxu0 0.0
        %1177 = vmatpush1.msra.mxu0 0.0
        %1178 = vmatprep.subr.mxu0 0.0
        %1179 = vmatpush1.msra.mxu0 0.0
        %1180 = vmatprep.subr.mxu0 0.0
        %1181 = vmatpush1.msra.mxu0 0.0
        %1182 = vmatprep.subr.mxu0 0.0
        %1183 = vmatpush1.msra.mxu0 0.0
        %1184 = vmatprep.subr.mxu0 0.0
        %1185 = vmatpush1.msra.mxu0 0.0
        %1186 = vmatprep.subr.mxu0 0.0
        %1187 = vmatpush1.msra.mxu0 0.0
        %1188 = vmatprep.subr.mxu0 0.0
        %1189 = vmatpush1.msra.mxu0 0.0
        %1190 = vmatprep.mubr.f32.mxu0 0.0
        %1191 = vmatmul.mubr.f32.gmra.mrb[0].mxu0 %v324
        %v1192 = vpop.f32.mrb[0].mxu0
        %v1193 = vadd.f32 %v1048, %v1192
        %v1194 = vpop.f32.mrb[0].mxu0
        %1195 = vmatprep.mubr.f32.mxu0 0.0
        %1196 = vmatmul.mubr.f32.gmra.mrb[0].mxu0 %v326
        %v1197 = vpop.f32.mrb[0].mxu0
        %v1198 = vadd.f32 %v1053, %v1197
        %v1199 = vpop.f32.mrb[0].mxu0
        %1200 = vmatprep.mubr.f32.mxu0 0.0
        %1201 = vmatmul.mubr.f32.gmra.mrb[0].mxu0 %v329
        %v1202 = vpop.f32.mrb[0].mxu0
        %v1203 = vadd.f32 %v1058, %v1202
        %v1204 = vpop.f32.mrb[0].mxu0
        %1205 = vmatprep.mubr.f32.mxu0 0.0
        %1206 = vmatmul.mubr.f32.gmra.mrb[0].mxu0 %v331
        %v1207 = vpop.f32.mrb[0].mxu0
        %v1208 = vadd.f32 %v1063, %v1207
        %v1209 = vpop.f32.mrb[0].mxu0
        %1210 = vmatprep.mubr.f32.mxu0 0.0
        %1211 = vmatmul.mubr.f32.gmra.mrb[0].mxu0 %v334
        %v1212 = vpop.f32.mrb[0].mxu0
        %v1213 = vadd.f32 %v1068, %v1212
        %v1214 = vpop.f32.mrb[0].mxu0
        %1215 = vmatprep.mubr.f32.mxu0 0.0
        %1216 = vmatmul.mubr.f32.gmra.mrb[0].mxu0 %v336
        %v1217 = vpop.f32.mrb[0].mxu0
        %v1218 = vadd.f32 %v1073, %v1217
        %v1219 = vpop.f32.mrb[0].mxu0
        %1220 = vmatprep.mubr.f32.mxu0 0.0
        %1221 = vmatmul.mubr.f32.gmra.mrb[0].mxu0 %v339
        %v1222 = vpop.f32.mrb[0].mxu0
        %v1223 = vadd.f32 %v1078, %v1222
        %v1224 = vpop.f32.mrb[0].mxu0
        %1225 = vmatprep.mubr.f32.mxu0 0.0
        %1226 = vmatmul.mubr.f32.gmra.mrb[0].mxu0 %v341
        %v1227 = vpop.f32.mrb[0].mxu0
        %v1228 = vadd.f32 %v1083, %v1227
        %v1229 = vpop.f32.mrb[0].mxu0
        %1230 = vmatprep.mubr.f32.mxu0 0.0
        %1231 = vmatmul.mubr.f32.gmra.mrb[0].mxu0 %v344
        %v1232 = vpop.f32.mrb[0].mxu0
        %v1233 = vadd.f32 %v1088, %v1232
        %v1234 = vpop.f32.mrb[0].mxu0
        %1235 = vmatprep.mubr.f32.mxu0 0.0
        %1236 = vmatmul.mubr.f32.gmra.mrb[0].mxu0 %v346
        %v1237 = vpop.f32.mrb[0].mxu0
        %v1238 = vadd.f32 %v1093, %v1237
        %v1239 = vpop.f32.mrb[0].mxu0
        %1240 = vmatprep.mubr.f32.mxu0 0.0
        %1241 = vmatmul.mubr.f32.gmra.mrb[0].mxu0 %v349
        %v1242 = vpop.f32.mrb[0].mxu0
        %v1243 = vadd.f32 %v1098, %v1242
        %v1244 = vpop.f32.mrb[0].mxu0
        %1245 = vmatprep.mubr.f32.mxu0 0.0
        %1246 = vmatmul.mubr.f32.gmra.mrb[0].mxu0 %v351
        %v1247 = vpop.f32.mrb[0].mxu0
        %v1248 = vadd.f32 %v1103, %v1247
        %v1249 = vpop.f32.mrb[0].mxu0
        %1250 = vmatprep.mubr.f32.mxu0 0.0
        %1251 = vmatmul.mubr.f32.gmra.mrb[0].mxu0 %v380
        %v1252 = vpop.f32.mrb[0].mxu0
        %v1253 = vadd.f32 %v1108, %v1252
        %v1254 = vpop.f32.mrb[0].mxu0
        %1255 = vmatprep.mubr.f32.mxu0 0.0
        %1256 = vmatmul.mubr.f32.gmra.mrb[0].mxu0 %v382
        %v1257 = vpop.f32.mrb[0].mxu0
        %v1258 = vadd.f32 %v1113, %v1257
        %v1259 = vpop.f32.mrb[0].mxu0
        %1260 = vmatprep.mubr.f32.mxu0 0.0
        %1261 = vmatmul.mubr.f32.gmra.mrb[0].mxu0 %v397
        %v1262 = vpop.f32.mrb[0].mxu0
        %v1263 = vadd.f32 %v1118, %v1262
        %v1264 = vpop.f32.mrb[0].mxu0
        %1265 = vmatprep.mubr.f32.mxu0 0.0
        %1266 = vmatmul.mubr.f32.gmra.mrb[0].mxu0 %v399
        %v1267 = vpop.f32.mrb[0].mxu0
        %v1268 = vadd.f32 %v1123, %v1267
        %v1269 = vpop.f32.mrb[0].mxu0
        %1270 = vdwg.mxu0
        %1271 = vst [vmem:[%s183] sm:$0xff] %v1193
        %1272 = vst [vmem:[%s183 + $0x8] sm:$0xff] %v1198
        %1273 = vst [vmem:[%s183 + $0x10] sm:$0xff] %v1203
        %1274 = vst [vmem:[%s183 + $0x18] sm:$0xff] %v1208
        %1275 = vst [vmem:[%s183 + $0x20] sm:$0xff] %v1213
        %1276 = vst [vmem:[%s183 + $0x28] sm:$0xff] %v1218
        %1277 = vst [vmem:[%s183 + $0x30] sm:$0xff] %v1223
        %1278 = vst [vmem:[%s183 + $0x38] sm:$0xff] %v1228
        %1279 = vst [vmem:[%s183 + $0x40] sm:$0xff] %v1233
        %1280 = vst [vmem:[%s183 + $0x48] sm:$0xff] %v1238
        %1281 = vst [vmem:[%s183 + $0x50] sm:$0xff] %v1243
        %1282 = vst [vmem:[%s183 + $0x58] sm:$0xff] %v1248
        %1283 = vst [vmem:[%s183 + $0x60] sm:$0xff] %v1253
        %1284 = vst [vmem:[%s183 + $0x68] sm:$0xff] %v1258
        %1285 = vst [vmem:[%s183 + $0x70] sm:$0xff] %v1263
        %1286 = vst [vmem:[%s183 + $0x78] sm:$0xff] %v1268
        %v1287 = vadd.f32 %v1193, %v1198
        %v1288 = vadd.f32 %v1287, %v1203
        %v1289 = vadd.f32 %v1288, %v1208
        %v1290 = vadd.f32 %v1289, %v1213
        %v1291 = vadd.f32 %v1290, %v1218
        %v1292 = vadd.f32 %v1291, %v1223
        %v1293 = vadd.f32 %v1292, %v1228
        %v1294 = vadd.f32 %v1293, %v1233
        %v1295 = vadd.f32 %v1294, %v1238
        %v1296 = vadd.f32 %v1295, %v1243
        %v1297 = vadd.f32 %v1296, %v1248
        %v1298 = vadd.f32 %v1297, %v1253
        %v1299 = vadd.f32 %v1298, %v1258
        %v1300 = vadd.f32 %v1299, %v1263
        %v1301 = vadd.f32 %v1300, %v1268
        %v1302 = vrot.slane %v1301, 4
        %v1303 = vadd.f32 %v1301, %v1302
        %v1304 = vrot.slane %v1303, 2
        %v1305 = vadd.f32 %v1303, %v1304
        %v1306 = vrot.slane %v1305, 1
        %v1307 = vadd.f32 %v1305, %v1306
        %v1308 = vmul.f32 %v1193, %v1193
        %v1309 = vmul.f32 %v1198, %v1198
        %v1310 = vmul.f32 %v1203, %v1203
        %v1311 = vmul.f32 %v1208, %v1208
        %v1312 = vmul.f32 %v1213, %v1213
        %v1313 = vmul.f32 %v1218, %v1218
        %v1314 = vmul.f32 %v1223, %v1223
        %v1315 = vmul.f32 %v1228, %v1228
        %v1316 = vmul.f32 %v1233, %v1233
        %v1317 = vmul.f32 %v1238, %v1238
        %v1318 = vmul.f32 %v1243, %v1243
        %v1319 = vmul.f32 %v1248, %v1248
        %v1320 = vmul.f32 %v1253, %v1253
        %v1321 = vmul.f32 %v1258, %v1258
        %v1322 = vmul.f32 %v1263, %v1263
        %v1323 = vmul.f32 %v1268, %v1268
        %v1324 = vadd.f32 %v1308, %v1309
        %v1325 = vadd.f32 %v1324, %v1310
        %v1326 = vadd.f32 %v1325, %v1311
        %v1327 = vadd.f32 %v1326, %v1312
        %v1328 = vadd.f32 %v1327, %v1313
        %v1329 = vadd.f32 %v1328, %v1314
        %v1330 = vadd.f32 %v1329, %v1315
        %v1331 = vadd.f32 %v1330, %v1316
        %v1332 = vadd.f32 %v1331, %v1317
        %v1333 = vadd.f32 %v1332, %v1318
        %v1334 = vadd.f32 %v1333, %v1319
        %v1335 = vadd.f32 %v1334, %v1320
        %v1336 = vadd.f32 %v1335, %v1321
        %v1337 = vadd.f32 %v1336, %v1322
        %v1338 = vadd.f32 %v1337, %v1323
        %v1339 = vrot.slane %v1338, 4
        %v1340 = vadd.f32 %v1338, %v1339
        %v1341 = vrot.slane %v1340, 2
        %v1342 = vadd.f32 %v1340, %v1341
        %v1343 = vrot.slane %v1342, 1
        %v1344 = vadd.f32 %v1342, %v1343
        %vm1345 = vcmask 1040384
        %v1346 = vsel %vm1345, %v1307, %v1344
        %vm1347 = vcmask 1041408
        %v1348 = vsel %vm1347, %v1346, 0.0
        %1349 = vst [vmem:[%s190] sm:$0xff] %v1348
        %s1350 = sand.u32 %s90, 1
        %s1351 = scalar_lea.sflag [#allocation3], %s1350
        %s1352 = sand.u32 %s90, 1
        %s1353 = smul.addr %s1352, 128
        %s1354 = scalar_lea.vmem [#allocation2], %s1353
        %s1355 = sand.u32 %s118, 1
        %s1356 = scalar_lea.sflag [#allocation5], %s1355
        %s1357 = sand.u32 %s118, 1
        %s1358 = smul.addr %s1357, 8
        %s1359 = scalar_lea.vmem [#allocation4], %s1358
        // Predicated region
        $region29: #{tpu_custom_call.1} parent=27 // pred_check
          %p1360 = pneg %p100
        $region30: #{tpu_custom_call.1} parent=27 // pred_check_branch
          %1362 = sbr.rel (%p1360) target = $region32
        $region31: #{tpu_custom_call.1} parent=27 // pred_region
          %s1363 = smul.u32 8, %s26
          %s1365 = ssub.s32 2048, 2048
          %1366 = vsyncadd %s1351, %s1365
          %s1367 = smul.addr %s1363, 2
          %s1368 = smul.addr %s25, 32
          %s1369 = sadd.s32 %s1367, %s1368
          %s1370 = smul.addr %s1369, 128
          %s1371 = scalar_lea.hbm %s2, %s1370
          %s1372 = sshll.u32 %s1354, 4
          %s1373 = int_to_ptr.vmem [resolvable:$true] %s1372
          %1378 = dma.vmem_to_hbm [thread:$0]  %s1373, 2048, %s1371, %s1351, 128, 128, 8
        $region32: #{tpu_custom_call.1} parent=27 // pred_fallthru
          _
        // Predicated region
        $region33: #{tpu_custom_call.1} parent=27 // pred_check
          %p1379 = pneg %p128
        $region34: #{tpu_custom_call.1} parent=27 // pred_check_branch
          %1381 = sbr.rel (%p1379) target = $region36
        $region35: #{tpu_custom_call.1} parent=27 // pred_region
          %s1383 = ssub.s32 128, 128
          %1384 = vsyncadd %s1356, %s1383
          %s1385 = smul.addr %s25, 2
          %s1386 = sadd.s32 %s26, %s1385
          %s1387 = smul.addr %s1386, 128
          %s1388 = scalar_lea.hbm %s3, %s1387
          %s1390 = sshll.u32 %s1359, 4
          %s1391 = int_to_ptr.vmem [resolvable:$true] %s1390
          %1393 = dma.vmem_to_hbm [thread:$0]  %s1391, 128, %s1388, %s1356
        $region36: #{tpu_custom_call.1} parent=27 // pred_fallthru
          _
      $region28: #{tpu_custom_call.1} parent=5 // pred_fallthru
        _
      %p1394 = scmp.le.s32.totalorder 2, %s16
      // Predicated region
      $region37: #{tpu_custom_call.1} parent=5 // pred_check
        %p1395 = pneg %p1394
      $region38: #{tpu_custom_call.1} parent=5 // pred_check_branch
        %1397 = sbr.rel (%p1395) target = $region40
      $region39: #{tpu_custom_call.1} parent=5 // pred_region
        %s1398 = ssub.s32 %s16, 2
        // Predicated region
        $region41: #{tpu_custom_call.1} parent=39 // pred_check
          %p1399 = pneg %p106
        $region42: #{tpu_custom_call.1} parent=39 // pred_check_branch
          %1401 = sbr.rel (%p1399) target = $region44
        $region43: #{tpu_custom_call.1} parent=39 // pred_region
          %s1402 = sand.u32 %s91, 1
          %s1403 = scalar_lea.sflag [#allocation3], %s1402
          %s1404 = sand.u32 %s91, 1
          %s1405 = smul.addr %s1404, 128
          %s1406 = scalar_lea.vmem [#allocation2], %s1405
          %1407 = dma.done %s1403, 2048
        $region44: #{tpu_custom_call.1} parent=39 // pred_fallthru
          _
        // Predicated region
        $region45: #{tpu_custom_call.1} parent=39 // pred_check
          %p1408 = pneg %p134
        $region46: #{tpu_custom_call.1} parent=39 // pred_check_branch
          %1410 = sbr.rel (%p1408) target = $region48
        $region47: #{tpu_custom_call.1} parent=39 // pred_region
          %s1411 = sand.u32 %s119, 1
          %s1412 = scalar_lea.sflag [#allocation5], %s1411
          %s1413 = sand.u32 %s119, 1
          %s1414 = smul.addr %s1413, 8
          %s1415 = scalar_lea.vmem [#allocation4], %s1414
          %1416 = dma.done %s1412, 128
        $region48: #{tpu_custom_call.1} parent=39 // pred_fallthru
          _
      $region40: #{tpu_custom_call.1} parent=5 // pred_fallthru
        _
    $region6: #{tpu_custom_call.1} parent=1 // loop_footer
      %s20 = sadd.s32 1, %s16
    $region7: #{tpu_custom_call.1} parent=1 // loop_footer_branch
      %15 = sbr.rel target = $region3
    $region8: #{tpu_custom_call.1} parent=1 // loop_exit
      _
    %1417 = vsyncpa [#allocation3], 1
    %s1418 = scalar_lea.sflag [#allocation3], 1
    %1419 = vsyncpa %s1418, 1
    %1420 = vsyncpa [#allocation5], 1
    %s1421 = scalar_lea.sflag [#allocation5], 1
    %1422 = vsyncpa %s1421, 1

</llo_original>
